<compile_context>
chip_gen: v5e
topology: v5e:2x2
jax: 0.10.0
libtpu: 0.0.40
codegen_flags: <defaults>
</compile_context>

<pallas_src>
import functools

import jax
import jax.numpy as jnp
from jax.experimental import pallas as pl
from jax.experimental.pallas import tpu as pltpu


def _cope_kernel(q_ref, a_ref, emb_ref, o_ref, *, npos_max):
    # q_ref:   (1, tq, D)    query tile
    # a_ref:   (1, tq, Sk)   attention-logit tile
    # emb_ref: (D, P)        shared position embedding (resident block)
    # o_ref:   (1, tq, Sk)   output tile
    gates = jax.nn.sigmoid(a_ref[0].astype(jnp.float32))        # (tq, Sk)
    tq, sk = gates.shape

    # Reverse inclusive cumsum along the lane axis:
    #   pos[i, j] = sum_{k >= j} gates[i, k]
    # Hillis-Steele scan: ceil(log2(Sk)) shift+add steps, shifting zeros in
    # from the right.  Kept in f32 so the interpolation weights are accurate.
    pos = gates
    shift = 1
    while shift < sk:
        shifted = jnp.concatenate(
            [pos[:, shift:], jnp.zeros((tq, shift), jnp.float32)], axis=-1)
        pos = pos + shifted
        shift *= 2
    pos = jnp.minimum(pos, jnp.float32(npos_max - 1))

    # Interpolation table: logits_int[i, p] = <q_i, pos_emb[:, p]>   -> (tq, P)
    # Runs in the input dtype (bf16 inputs hit the native bf16 MXU path),
    # accumulating in f32.
    logits_int = jnp.dot(
        q_ref[0], emb_ref[...].astype(q_ref.dtype),
        precision=jax.lax.Precision.HIGHEST,
        preferred_element_type=jnp.float32)

    # Single-pass linear-interpolation gather over the small static position
    # axis.  Equivalent to w*gather(ceil) + (1-w)*gather(floor), but needs only
    # one accumulator and ~5 VPU ops per element per p.
    acc = jnp.zeros_like(pos)
    for p in range(npos_max):
        w_p = jnp.maximum(1.0 - jnp.abs(pos - jnp.float32(p)), 0.0)
        acc = acc + logits_int[:, p:p + 1] * w_p

    o_ref[0] = acc.astype(o_ref.dtype)


def _pick_tq(sq, target=256):
    """Largest Sq tile <= target that divides Sq and satisfies the (8,.) rule."""
    if sq <= target:
        return sq
    for t in range(target - target % 8, 7, -8):
        if sq % t == 0:
            return t
    return sq


def cope_forward(query, attn_logits, pos_emb, *, npos_max, tq=None):
    """query: (B, Sq, D); attn_logits: (B, Sq, Sk); pos_emb: (D, npos_max)."""
    B, Sq, D = query.shape
    Ba, Sqa, Sk = attn_logits.shape
    assert (Ba, Sqa) == (B, Sq)
    assert pos_emb.shape == (D, npos_max)

    if tq is None:
        tq = _pick_tq(Sq)
    assert Sq % tq == 0 and (tq == Sq or tq % 8 == 0)

    kernel = functools.partial(_cope_kernel, npos_max=npos_max)

    # VMEM budget: double-buffered in/out tiles + ~4 live f32 (tq, Sk) temps.
    itemsize = jnp.dtype(query.dtype).itemsize
    est_bytes = (4 * tq * Sk * 4                       # live f32 temporaries
                 + 4 * tq * Sk * itemsize              # 2x-buffered a + out tiles
                 + 2 * tq * D * itemsize + D * npos_max * 4)
    params = dict(dimension_semantics=("parallel", "parallel"))
    if est_bytes > 24 * 1024 * 1024:
        # Raise scoped VMEM only when big tiles need it; cap for v7x's 64 MiB.
        params["vmem_limit_bytes"] = int(min(est_bytes + (8 << 20),
                                             64 * 1024 * 1024))

    return pl.pallas_call(
        kernel,
        out_shape=jax.ShapeDtypeStruct((B, Sq, Sk), query.dtype),
        grid_spec=pltpu.PrefetchScalarGridSpec(
            num_scalar_prefetch=0,
            grid=(B, Sq // tq),
            in_specs=[
                pl.BlockSpec((1, tq, D), lambda b, i: (b, i, 0)),
                pl.BlockSpec((1, tq, Sk), lambda b, i: (b, i, 0)),
                pl.BlockSpec((D, npos_max), lambda b, i: (0, 0)),  # resident
            ],
            out_specs=pl.BlockSpec((1, tq, Sk), lambda b, i: (b, i, 0)),
        ),
        compiler_params=pltpu.CompilerParams(**params),
    )(query, attn_logits, pos_emb)


def cope_reference(query, attn_logits, pos_emb, *, npos_max):
    gates = jax.nn.sigmoid(attn_logits)
    pos = jnp.flip(jnp.cumsum(jnp.flip(gates, -1), -1), -1)
    pos = jnp.minimum(pos, npos_max - 1)
    pos_ceil = jnp.ceil(pos).astype(jnp.int32)
    pos_floor = jnp.floor(pos).astype(jnp.int32)
    logits_int = jnp.einsum("bqd,dp->bqp", query, pos_emb,
                            precision=jax.lax.Precision.HIGHEST)
    logits_ceil = jnp.take_along_axis(logits_int, pos_ceil, axis=-1)
    logits_floor = jnp.take_along_axis(logits_int, pos_floor, axis=-1)
    w = pos - pos_floor
    return logits_ceil * w + logits_floor * (1 - w)


if __name__ == "__main__":
    # Lane-dense toy shapes (Sk multiple of 128, Sq multiple of 8).
    B, Sq, Sk, D, NPOS = 2, 128, 128, 32, 8

    key = jax.random.PRNGKey(0)
    kq, ka, ke = jax.random.split(key, 3)
    query = jax.random.normal(kq, (B, Sq, D), dtype=jnp.float32)
    attn_logits = jax.random.normal(ka, (B, Sq, Sk), dtype=jnp.float32)
    # PyTorch inits pos_emb to zeros; small deterministic randoms exercise the
    # gather/interpolation path non-trivially.
    pos_emb = 0.02 * jax.random.normal(ke, (D, NPOS), dtype=jnp.float32)

    # tq=64 exercises the Sq tiling (grid = (B, 2)) at toy size.
    out = cope_forward(query, attn_logits, pos_emb, npos_max=NPOS, tq=64)
    out = jax.block_until_ready(out)

    ref = cope_reference(query, attn_logits, pos_emb, npos_max=NPOS)
    assert out.shape == (B, Sq, Sk)
    max_err = float(jnp.max(jnp.abs(out - ref)))
    assert jnp.allclose(out, ref, atol=1e-4, rtol=1e-4), max_err

    print("KERNEL_OK")
</pallas_src>

<mosaic_0001>
module attributes {stable_mosaic.version = 11 : i64} {
  func.func @_cope_kernel(%arg0: i32, %arg1: i32, %arg2: memref<1x64x32xf32, #tpu.memory_space<vmem>>, %arg3: memref<1x64x128xf32, #tpu.memory_space<vmem>>, %arg4: memref<32x8xf32, #tpu.memory_space<vmem>>, %arg5: memref<1x64x128xf32, #tpu.memory_space<vmem>>) attributes {dimension_semantics = [#tpu.dimension_semantics<parallel>, #tpu.dimension_semantics<parallel>], iteration_bounds = array<i64: 2, 2>, scalar_prefetch = 0 : i64, scratch_operands = 0 : i64, tpu.core_type = #tpu.core_type<tc>, window_params = [{transform_indices = @transform_0, window_bounds = array<i64: 1, 64, 32>}, {transform_indices = @transform_1, window_bounds = array<i64: 1, 64, 128>}, {pipeline_mode = #tpu.pipeline_mode<synchronous>, transform_indices = @transform_2, window_bounds = array<i64: 32, 8>}, {transform_indices = @transform_3, window_bounds = array<i64: 1, 64, 128>}]} {
    %c0 = arith.constant 0 : index
    %c0_0 = arith.constant 0 : index
    %c0_1 = arith.constant 0 : index
    %0 = vector.load %arg3[%c0, %c0_0, %c0_1] : memref<1x64x128xf32, #tpu.memory_space<vmem>>, vector<1x64x128xf32>
    %1 = vector.shape_cast %0 : vector<1x64x128xf32> to vector<64x128xf32>
    %2 = arith.negf %1 : vector<64x128xf32>
    %3 = math.exp %2 : vector<64x128xf32>
    %cst = arith.constant 1.000000e+00 : f32
    %4 = vector.broadcast %cst : f32 to vector<64x128xf32>
    %5 = arith.addf %4, %3 : vector<64x128xf32>
    %6 = arith.divf %4, %5 : vector<64x128xf32>
    %7 = vector.extract_strided_slice %6 {offsets = [0, 1], sizes = [64, 127], strides = [1, 1]} : vector<64x128xf32> to vector<64x127xf32>
    %cst_2 = arith.constant 0.000000e+00 : f32
    %8 = vector.broadcast %cst_2 : f32 to vector<64x1xf32>
    %9 = tpu.concatenate %7, %8 in 1 : vector<64x127xf32>, vector<64x1xf32> -> vector<64x128xf32>
    %10 = arith.addf %6, %9 : vector<64x128xf32>
    %11 = vector.extract_strided_slice %10 {offsets = [0, 2], sizes = [64, 126], strides = [1, 1]} : vector<64x128xf32> to vector<64x126xf32>
    %cst_3 = arith.constant 0.000000e+00 : f32
    %12 = vector.broadcast %cst_3 : f32 to vector<64x2xf32>
    %13 = tpu.concatenate %11, %12 in 1 : vector<64x126xf32>, vector<64x2xf32> -> vector<64x128xf32>
    %14 = arith.addf %10, %13 : vector<64x128xf32>
    %15 = vector.extract_strided_slice %14 {offsets = [0, 4], sizes = [64, 124], strides = [1, 1]} : vector<64x128xf32> to vector<64x124xf32>
    %cst_4 = arith.constant 0.000000e+00 : f32
    %16 = vector.broadcast %cst_4 : f32 to vector<64x4xf32>
    %17 = tpu.concatenate %15, %16 in 1 : vector<64x124xf32>, vector<64x4xf32> -> vector<64x128xf32>
    %18 = arith.addf %14, %17 : vector<64x128xf32>
    %19 = vector.extract_strided_slice %18 {offsets = [0, 8], sizes = [64, 120], strides = [1, 1]} : vector<64x128xf32> to vector<64x120xf32>
    %cst_5 = arith.constant 0.000000e+00 : f32
    %20 = vector.broadcast %cst_5 : f32 to vector<64x8xf32>
    %21 = tpu.concatenate %19, %20 in 1 : vector<64x120xf32>, vector<64x8xf32> -> vector<64x128xf32>
    %22 = arith.addf %18, %21 : vector<64x128xf32>
    %23 = vector.extract_strided_slice %22 {offsets = [0, 16], sizes = [64, 112], strides = [1, 1]} : vector<64x128xf32> to vector<64x112xf32>
    %cst_6 = arith.constant 0.000000e+00 : f32
    %24 = vector.broadcast %cst_6 : f32 to vector<64x16xf32>
    %25 = tpu.concatenate %23, %24 in 1 : vector<64x112xf32>, vector<64x16xf32> -> vector<64x128xf32>
    %26 = arith.addf %22, %25 : vector<64x128xf32>
    %27 = vector.extract_strided_slice %26 {offsets = [0, 32], sizes = [64, 96], strides = [1, 1]} : vector<64x128xf32> to vector<64x96xf32>
    %cst_7 = arith.constant 0.000000e+00 : f32
    %28 = vector.broadcast %cst_7 : f32 to vector<64x32xf32>
    %29 = tpu.concatenate %27, %28 in 1 : vector<64x96xf32>, vector<64x32xf32> -> vector<64x128xf32>
    %30 = arith.addf %26, %29 : vector<64x128xf32>
    %31 = vector.extract_strided_slice %30 {offsets = [0, 64], sizes = [64, 64], strides = [1, 1]} : vector<64x128xf32> to vector<64x64xf32>
    %cst_8 = arith.constant 0.000000e+00 : f32
    %32 = vector.broadcast %cst_8 : f32 to vector<64x64xf32>
    %33 = tpu.concatenate %31, %32 in 1 : vector<64x64xf32>, vector<64x64xf32> -> vector<64x128xf32>
    %34 = arith.addf %30, %33 : vector<64x128xf32>
    %cst_9 = arith.constant 7.000000e+00 : f32
    %35 = vector.broadcast %cst_9 : f32 to vector<64x128xf32>
    %36 = arith.minimumf %34, %35 : vector<64x128xf32>
    %c0_10 = arith.constant 0 : index
    %c0_11 = arith.constant 0 : index
    %c0_12 = arith.constant 0 : index
    %37 = vector.load %arg2[%c0_10, %c0_11, %c0_12] : memref<1x64x32xf32, #tpu.memory_space<vmem>>, vector<1x64x32xf32>
    %38 = vector.shape_cast %37 : vector<1x64x32xf32> to vector<64x32xf32>
    %c0_13 = arith.constant 0 : index
    %c0_14 = arith.constant 0 : index
    %39 = vector.load %arg4[%c0_13, %c0_14] : memref<32x8xf32, #tpu.memory_space<vmem>>, vector<32x8xf32>
    %cst_15 = arith.constant dense<0.000000e+00> : vector<64x8xf32>
    %40 = tpu.matmul %38, %39, %cst_15 {dimension_numbers = #tpu.dot_dimension_numbers<[1], [0], [0], [1], [0, 0, 1, 1], [], []>, precision = #tpu.contract_precision<fp32>} : vector<64x32xf32>, vector<32x8xf32>, vector<64x8xf32> -> vector<64x8xf32>
    %cst_16 = arith.constant 0.000000e+00 : f32
    %41 = vector.broadcast %cst_16 : f32 to vector<64x128xf32>
    %cst_17 = arith.constant 0.000000e+00 : f32
    %42 = vector.broadcast %cst_17 : f32 to vector<64x128xf32>
    %43 = arith.subf %36, %42 : vector<64x128xf32>
    %44 = math.absf %43 : vector<64x128xf32>
    %cst_18 = arith.constant 1.000000e+00 : f32
    %45 = vector.broadcast %cst_18 : f32 to vector<64x128xf32>
    %46 = arith.subf %45, %44 : vector<64x128xf32>
    %cst_19 = arith.constant 0.000000e+00 : f32
    %47 = vector.broadcast %cst_19 : f32 to vector<64x128xf32>
    %48 = arith.maximumf %46, %47 : vector<64x128xf32>
    %49 = vector.extract_strided_slice %40 {offsets = [0, 0], sizes = [64, 1], strides = [1, 1]} : vector<64x8xf32> to vector<64x1xf32>
    %50 = vector.broadcast %49 : vector<64x1xf32> to vector<64x128xf32>
    %51 = arith.mulf %50, %48 : vector<64x128xf32>
    %52 = arith.addf %41, %51 : vector<64x128xf32>
    %cst_20 = arith.constant 1.000000e+00 : f32
    %53 = vector.broadcast %cst_20 : f32 to vector<64x128xf32>
    %54 = arith.subf %36, %53 : vector<64x128xf32>
    %55 = math.absf %54 : vector<64x128xf32>
    %cst_21 = arith.constant 1.000000e+00 : f32
    %56 = vector.broadcast %cst_21 : f32 to vector<64x128xf32>
    %57 = arith.subf %56, %55 : vector<64x128xf32>
    %cst_22 = arith.constant 0.000000e+00 : f32
    %58 = vector.broadcast %cst_22 : f32 to vector<64x128xf32>
    %59 = arith.maximumf %57, %58 : vector<64x128xf32>
    %60 = vector.extract_strided_slice %40 {offsets = [0, 1], sizes = [64, 1], strides = [1, 1]} : vector<64x8xf32> to vector<64x1xf32>
    %61 = vector.broadcast %60 : vector<64x1xf32> to vector<64x128xf32>
    %62 = arith.mulf %61, %59 : vector<64x128xf32>
    %63 = arith.addf %52, %62 : vector<64x128xf32>
    %cst_23 = arith.constant 2.000000e+00 : f32
    %64 = vector.broadcast %cst_23 : f32 to vector<64x128xf32>
    %65 = arith.subf %36, %64 : vector<64x128xf32>
    %66 = math.absf %65 : vector<64x128xf32>
    %cst_24 = arith.constant 1.000000e+00 : f32
    %67 = vector.broadcast %cst_24 : f32 to vector<64x128xf32>
    %68 = arith.subf %67, %66 : vector<64x128xf32>
    %cst_25 = arith.constant 0.000000e+00 : f32
    %69 = vector.broadcast %cst_25 : f32 to vector<64x128xf32>
    %70 = arith.maximumf %68, %69 : vector<64x128xf32>
    %71 = vector.extract_strided_slice %40 {offsets = [0, 2], sizes = [64, 1], strides = [1, 1]} : vector<64x8xf32> to vector<64x1xf32>
    %72 = vector.broadcast %71 : vector<64x1xf32> to vector<64x128xf32>
    %73 = arith.mulf %72, %70 : vector<64x128xf32>
    %74 = arith.addf %63, %73 : vector<64x128xf32>
    %cst_26 = arith.constant 3.000000e+00 : f32
    %75 = vector.broadcast %cst_26 : f32 to vector<64x128xf32>
    %76 = arith.subf %36, %75 : vector<64x128xf32>
    %77 = math.absf %76 : vector<64x128xf32>
    %cst_27 = arith.constant 1.000000e+00 : f32
    %78 = vector.broadcast %cst_27 : f32 to vector<64x128xf32>
    %79 = arith.subf %78, %77 : vector<64x128xf32>
    %cst_28 = arith.constant 0.000000e+00 : f32
    %80 = vector.broadcast %cst_28 : f32 to vector<64x128xf32>
    %81 = arith.maximumf %79, %80 : vector<64x128xf32>
    %82 = vector.extract_strided_slice %40 {offsets = [0, 3], sizes = [64, 1], strides = [1, 1]} : vector<64x8xf32> to vector<64x1xf32>
    %83 = vector.broadcast %82 : vector<64x1xf32> to vector<64x128xf32>
    %84 = arith.mulf %83, %81 : vector<64x128xf32>
    %85 = arith.addf %74, %84 : vector<64x128xf32>
    %cst_29 = arith.constant 4.000000e+00 : f32
    %86 = vector.broadcast %cst_29 : f32 to vector<64x128xf32>
    %87 = arith.subf %36, %86 : vector<64x128xf32>
    %88 = math.absf %87 : vector<64x128xf32>
    %cst_30 = arith.constant 1.000000e+00 : f32
    %89 = vector.broadcast %cst_30 : f32 to vector<64x128xf32>
    %90 = arith.subf %89, %88 : vector<64x128xf32>
    %cst_31 = arith.constant 0.000000e+00 : f32
    %91 = vector.broadcast %cst_31 : f32 to vector<64x128xf32>
    %92 = arith.maximumf %90, %91 : vector<64x128xf32>
    %93 = vector.extract_strided_slice %40 {offsets = [0, 4], sizes = [64, 1], strides = [1, 1]} : vector<64x8xf32> to vector<64x1xf32>
    %94 = vector.broadcast %93 : vector<64x1xf32> to vector<64x128xf32>
    %95 = arith.mulf %94, %92 : vector<64x128xf32>
    %96 = arith.addf %85, %95 : vector<64x128xf32>
    %cst_32 = arith.constant 5.000000e+00 : f32
    %97 = vector.broadcast %cst_32 : f32 to vector<64x128xf32>
    %98 = arith.subf %36, %97 : vector<64x128xf32>
    %99 = math.absf %98 : vector<64x128xf32>
    %cst_33 = arith.constant 1.000000e+00 : f32
    %100 = vector.broadcast %cst_33 : f32 to vector<64x128xf32>
    %101 = arith.subf %100, %99 : vector<64x128xf32>
    %cst_34 = arith.constant 0.000000e+00 : f32
    %102 = vector.broadcast %cst_34 : f32 to vector<64x128xf32>
    %103 = arith.maximumf %101, %102 : vector<64x128xf32>
    %104 = vector.extract_strided_slice %40 {offsets = [0, 5], sizes = [64, 1], strides = [1, 1]} : vector<64x8xf32> to vector<64x1xf32>
    %105 = vector.broadcast %104 : vector<64x1xf32> to vector<64x128xf32>
    %106 = arith.mulf %105, %103 : vector<64x128xf32>
    %107 = arith.addf %96, %106 : vector<64x128xf32>
    %cst_35 = arith.constant 6.000000e+00 : f32
    %108 = vector.broadcast %cst_35 : f32 to vector<64x128xf32>
    %109 = arith.subf %36, %108 : vector<64x128xf32>
    %110 = math.absf %109 : vector<64x128xf32>
    %cst_36 = arith.constant 1.000000e+00 : f32
    %111 = vector.broadcast %cst_36 : f32 to vector<64x128xf32>
    %112 = arith.subf %111, %110 : vector<64x128xf32>
    %cst_37 = arith.constant 0.000000e+00 : f32
    %113 = vector.broadcast %cst_37 : f32 to vector<64x128xf32>
    %114 = arith.maximumf %112, %113 : vector<64x128xf32>
    %115 = vector.extract_strided_slice %40 {offsets = [0, 6], sizes = [64, 1], strides = [1, 1]} : vector<64x8xf32> to vector<64x1xf32>
    %116 = vector.broadcast %115 : vector<64x1xf32> to vector<64x128xf32>
    %117 = arith.mulf %116, %114 : vector<64x128xf32>
    %118 = arith.addf %107, %117 : vector<64x128xf32>
    %cst_38 = arith.constant 7.000000e+00 : f32
    %119 = vector.broadcast %cst_38 : f32 to vector<64x128xf32>
    %120 = arith.subf %36, %119 : vector<64x128xf32>
    %121 = math.absf %120 : vector<64x128xf32>
    %cst_39 = arith.constant 1.000000e+00 : f32
    %122 = vector.broadcast %cst_39 : f32 to vector<64x128xf32>
    %123 = arith.subf %122, %121 : vector<64x128xf32>
    %cst_40 = arith.constant 0.000000e+00 : f32
    %124 = vector.broadcast %cst_40 : f32 to vector<64x128xf32>
    %125 = arith.maximumf %123, %124 : vector<64x128xf32>
    %126 = vector.extract_strided_slice %40 {offsets = [0, 7], sizes = [64, 1], strides = [1, 1]} : vector<64x8xf32> to vector<64x1xf32>
    %127 = vector.broadcast %126 : vector<64x1xf32> to vector<64x128xf32>
    %128 = arith.mulf %127, %125 : vector<64x128xf32>
    %129 = arith.addf %118, %128 : vector<64x128xf32>
    %c0_41 = arith.constant 0 : index
    %c0_42 = arith.constant 0 : index
    %c0_43 = arith.constant 0 : index
    %130 = vector.load %arg5[%c0_41, %c0_42, %c0_43] : memref<1x64x128xf32, #tpu.memory_space<vmem>>, vector<1x64x128xf32>
    %131 = vector.shape_cast %130 : vector<1x64x128xf32> to vector<64x128xf32>
    %132 = vector.shape_cast %129 : vector<64x128xf32> to vector<1x64x128xf32>
    tpu.vector_store %arg5[%c0_41, %c0_42, %c0_43], %132 {strides = array<i32>} : memref<1x64x128xf32, #tpu.memory_space<vmem>>, vector<1x64x128xf32>,
    return
  }
  func.func @transform_0(%arg0: i32, %arg1: i32) -> (i32, i32, i32) {
    %c0_i32 = arith.constant 0 : i32
    %c0_i32_0 = arith.constant 0 : i32
    return %arg0, %arg1, %c0_i32 : i32, i32, i32
  }
  func.func @transform_1(%arg0: i32, %arg1: i32) -> (i32, i32, i32) {
    %c0_i32 = arith.constant 0 : i32
    %c0_i32_0 = arith.constant 0 : i32
    return %arg0, %arg1, %c0_i32 : i32, i32, i32
  }
  func.func @transform_2(%arg0: i32, %arg1: i32) -> (i32, i32) {
    %c0_i32 = arith.constant 0 : i32
    %c0_i32_0 = arith.constant 0 : i32
    %c0_i32_1 = arith.constant 0 : i32
    return %c0_i32, %c0_i32_0 : i32, i32
  }
  func.func @transform_3(%arg0: i32, %arg1: i32) -> (i32, i32, i32) {
    %c0_i32 = arith.constant 0 : i32
    %c0_i32_0 = arith.constant 0 : i32
    return %arg0, %arg1, %c0_i32 : i32, i32, i32
  }
}

</mosaic_0001>

<llo_original>
// kernel: tpu_custom_call.1
$region0: #{tpu_custom_call.1}
  #allocation0 [shape = 'u32[]', space=smem, size = 0x4, offset = 0x4, fixed_abs, tag = 'smem constant byte address 0x4 - core index']
  #allocation1 [shape = 'u32[72,128]{1,0:T(1,128)}', space=vmem, size = 0x9000, scoped, tag = 'internal scratch']
  %s0 = inlined_call_operand.vmem [shape: f32[2,128,32], index: 0, kind: input, shape index: {}]
  %s1 = inlined_call_operand.vmem [shape: f32[2,128,128], index: 1, kind: input, shape index: {}]
  %s2 = inlined_call_operand.vmem [shape: f32[32,8], index: 2, kind: input, shape index: {}]
  %s3 = inlined_call_operand.hbm [shape: f32[2,128,128], index: 3, kind: output, shape index: {}]
  %s4 = sld [smem:[#allocation0]]
  $region45: #{tpu_custom_call.1} parent=0
    _
  %s6 = ssub.s32 1, %s4
  %s7 = scalar_select 0, %s6, %s4
  $region1: #{tpu_custom_call.1} parent=0
    #allocation2 [shape = 'u8[65536]{0}', space=vmem, size = 0x10000, scoped, tag = 'output window, operand 0']
    #allocation3 [shape = 's32[2]{0}', space=sflag, size = 0x8, scoped, tag = 'scoped memory for tpu_custom_call.1']
    %8 = vsyncpa [#allocation3], 0
    %s9 = scalar_lea.sflag [#allocation3], 1
    %10 = vsyncpa %s9, 0
    loop: start=0, step=1, limit=6
    $region2: #{tpu_custom_call.1} parent=1 // loop_pre_header
      _
    $region3: #{tpu_custom_call.1} parent=1 // loop_header
      %s12 = sphi 0, %s16
      %p13 = scmp.ge.s32.totalorder %s12, 6
      %s19 = sphi 0, %s31
      %s20 = sphi 0, %s27
      %s21 = sphi 0, %s19
      %s22 = sphi 0, %s20
      %s23 = sphi 0, %s21
      %s24 = sphi 0, %s22
      %s36 = sphi 0, %s38
      %s39 = sphi 0, %s36
      %s40 = sphi 0, %s39
      %s56 = sphi 0, %s40
      %s64 = sphi 0, %s66
      %s67 = sphi 0, %s64
      %s68 = sphi 0, %s67
      %s84 = sphi 0, %s68
      %s88 = sphi 0, %s88
      %s90 = sphi 0, %s88
      %s91 = sphi 0, %s90
      %s105 = sphi 0, %s91
      %s113 = sphi 0, %s115
      %s116 = sphi 0, %s113
      %s117 = sphi 0, %s116
      %s133 = sphi 0, %s117
    $region4: #{tpu_custom_call.1} parent=1 // loop_header_branch
      %15 = sbr.rel (%p13) target = $region8
    $region5: #{tpu_custom_call.1} parent=1 // loop_body
      %s17 = ssub.s32 %s12, 1
      %s18 = ssub.s32 %s12, 2
      %s25 = sadd.s32 1, %s20
      %p26 = scmp.ge.s32.totalorder %s25, 2
      %s27 = scalar_select %p26, 0, %s25
      %s28 = sadd.s32 1, %s19
      %s29 = scalar_select %p26, %s28, %s19
      %p30 = scmp.ge.s32.totalorder %s29, 2
      %s31 = scalar_select %p30, 0, %s29
      %s32 = ssub.s32 %s19, %s31
      %s33 = ssub.s32 %s20, %s27
      %s34 = sor.u32 %s32, %s33
      %p35 = scmp.eq.s32.totalorder %s34, 0
      %s37 = sadd.s32 %s36, 1
      %s38 = scalar_select %p35, %s36, %s37
      %p41 = pneg %p35
      %p42 = scmp.eq.s32.totalorder %s12, 3
      %p43 = por %p41, %p42
      %p44 = scmp.ne.s32.totalorder %s36, %s39
      %p45 = scmp.eq.s32.totalorder %s12, 0
      %p46 = por %p44, %p45
      %p47 = scmp.ne.s32.totalorder %s36, %s39
      %p48 = scmp.eq.s32.totalorder %s17, 3
      %p49 = por %p47, %p48
      %p50 = scmp.ne.s32.totalorder %s39, %s40
      %p51 = scmp.eq.s32.totalorder %s17, 0
      %p52 = por %p50, %p51
      %p53 = scmp.ne.s32.totalorder %s39, %s40
      %p54 = scmp.eq.s32.totalorder %s18, 3
      %p55 = por %p53, %p54
      %p57 = scmp.ne.s32.totalorder %s40, %s56
      %p58 = scmp.eq.s32.totalorder %s18, 0
      %p59 = por %p57, %p58
      %s60 = ssub.s32 %s19, %s31
      %s61 = ssub.s32 %s20, %s27
      %s62 = sor.u32 %s60, %s61
      %p63 = scmp.eq.s32.totalorder %s62, 0
      %s65 = sadd.s32 %s64, 1
      %s66 = scalar_select %p63, %s64, %s65
      %p69 = pneg %p63
      %p70 = scmp.eq.s32.totalorder %s12, 3
      %p71 = por %p69, %p70
      %p72 = scmp.ne.s32.totalorder %s64, %s67
      %p73 = scmp.eq.s32.totalorder %s12, 0
      %p74 = por %p72, %p73
      %p75 = scmp.ne.s32.totalorder %s64, %s67
      %p76 = scmp.eq.s32.totalorder %s17, 3
      %p77 = por %p75, %p76
      %p78 = scmp.ne.s32.totalorder %s67, %s68
      %p79 = scmp.eq.s32.totalorder %s17, 0
      %p80 = por %p78, %p79
      %p81 = scmp.ne.s32.totalorder %s67, %s68
      %p82 = scmp.eq.s32.totalorder %s18, 3
      %p83 = por %p81, %p82
      %p85 = scmp.ne.s32.totalorder %s68, %s84
      %p86 = scmp.eq.s32.totalorder %s18, 0
      %p87 = por %p85, %p86
      %s89 = sadd.s32 %s88, 1
      %p92 = scmp.eq.s32.totalorder %s12, 3
      %p93 = scmp.ne.s32.totalorder %s88, %s90
      %p94 = scmp.eq.s32.totalorder %s12, 0
      %p95 = por %p93, %p94
      %p96 = scmp.ne.s32.totalorder %s88, %s90
      %p97 = scmp.eq.s32.totalorder %s17, 3
      %p98 = por %p96, %p97
      %p99 = scmp.ne.s32.totalorder %s90, %s91
      %p100 = scmp.eq.s32.totalorder %s17, 0
      %p101 = por %p99, %p100
      %p102 = scmp.ne.s32.totalorder %s90, %s91
      %p103 = scmp.eq.s32.totalorder %s18, 3
      %p104 = por %p102, %p103
      %p106 = scmp.ne.s32.totalorder %s91, %s105
      %p107 = scmp.eq.s32.totalorder %s18, 0
      %p108 = por %p106, %p107
      %s109 = ssub.s32 %s19, %s31
      %s110 = ssub.s32 %s20, %s27
      %s111 = sor.u32 %s109, %s110
      %p112 = scmp.eq.s32.totalorder %s111, 0
      %s114 = sadd.s32 %s113, 1
      %s115 = scalar_select %p112, %s113, %s114
      %p118 = pneg %p112
      %p119 = scmp.eq.s32.totalorder %s12, 3
      %p120 = por %p118, %p119
      %p121 = scmp.ne.s32.totalorder %s113, %s116
      %p122 = scmp.eq.s32.totalorder %s12, 0
      %p123 = por %p121, %p122
      %p124 = scmp.ne.s32.totalorder %s113, %s116
      %p125 = scmp.eq.s32.totalorder %s17, 3
      %p126 = por %p124, %p125
      %p127 = scmp.ne.s32.totalorder %s116, %s117
      %p128 = scmp.eq.s32.totalorder %s17, 0
      %p129 = por %p127, %p128
      %p130 = scmp.ne.s32.totalorder %s116, %s117
      %p131 = scmp.eq.s32.totalorder %s18, 3
      %p132 = por %p130, %p131
      %p134 = scmp.ne.s32.totalorder %s117, %s133
      %p135 = scmp.eq.s32.totalorder %s18, 0
      %p136 = por %p134, %p135
      %p137 = scmp.le.s32.totalorder 1, %s12
      %p138 = scmp.lt.s32.totalorder %s12, 5
      %p139 = pnand %p137, %p138
      %p140 = pneg %p139
      // Predicated region
      $region9: #{tpu_custom_call.1} parent=5 // pred_check
        _
      $region10: #{tpu_custom_call.1} parent=5 // pred_check_branch
        %142 = sbr.rel (%p139) target = $region12
      $region11: #{tpu_custom_call.1} parent=5 // pred_region
        %s143 = ssub.s32 %s12, 1
        // Predicated region
        $region13: #{tpu_custom_call.1} parent=11 // pred_check
          %p144 = pneg %p101
        $region14: #{tpu_custom_call.1} parent=11 // pred_check_branch
          %146 = sbr.rel (%p144) target = $region16
        $region15: #{tpu_custom_call.1} parent=11 // pred_region
          _
        $region16: #{tpu_custom_call.1} parent=11 // pred_fallthru
          _
      $region12: #{tpu_custom_call.1} parent=5 // pred_fallthru
        _
      %p147 = scmp.lt.s32.totalorder %s12, 4
      // Predicated region
      $region17: #{tpu_custom_call.1} parent=5 // pred_check
        %p148 = pneg %p147
      $region18: #{tpu_custom_call.1} parent=5 // pred_check_branch
        %150 = sbr.rel (%p148) target = $region20
      $region19: #{tpu_custom_call.1} parent=5 // pred_region
        // Predicated region
        $region21: #{tpu_custom_call.1} parent=19 // pred_check
          %p151 = pneg %p46
        $region22: #{tpu_custom_call.1} parent=19 // pred_check_branch
          %153 = sbr.rel (%p151) target = $region24
        $region23: #{tpu_custom_call.1} parent=19 // pred_region
          %s154 = smul.u32 8, %s20
          %p155 = scmp.lt.s32.totalorder %s19, 1
          %s156 = scalar_select %p155, %s19, 1
          %p157 = scmp.lt.s32.totalorder %s154, 15
          %s158 = scalar_select %p157, %s154, 15
          %s159 = smul.addr %s156, 16
          %s160 = sadd.s32 %s158, %s159
          %s161 = smul.addr %s160, 8
          %s162 = scalar_lea.vmem %s0, %s161
          %s163 = smul.u32 8, %s20
        $region24: #{tpu_custom_call.1} parent=19 // pred_fallthru
          _
        // Predicated region
        $region25: #{tpu_custom_call.1} parent=19 // pred_check
          %p164 = pneg %p74
        $region26: #{tpu_custom_call.1} parent=19 // pred_check_branch
          %166 = sbr.rel (%p164) target = $region28
        $region27: #{tpu_custom_call.1} parent=19 // pred_region
          %s167 = smul.u32 8, %s20
          %p168 = scmp.lt.s32.totalorder %s19, 1
          %s169 = scalar_select %p168, %s19, 1
          %p170 = scmp.lt.s32.totalorder %s167, 15
          %s171 = scalar_select %p170, %s167, 15
          %s172 = smul.addr %s169, 16
          %s173 = sadd.s32 %s171, %s172
          %s174 = smul.addr %s173, 8
          %s175 = scalar_lea.vmem %s1, %s174
          %s176 = smul.u32 8, %s20
        $region28: #{tpu_custom_call.1} parent=19 // pred_fallthru
          _
      $region20: #{tpu_custom_call.1} parent=5 // pred_fallthru
        _
      %p177 = scmp.le.s32.totalorder 1, %s12
      %p178 = scmp.lt.s32.totalorder %s12, 5
      %p179 = pnand %p177, %p178
      %p180 = pneg %p179
      // Predicated region
      $region29: #{tpu_custom_call.1} parent=5 // pred_check
        _
      $region30: #{tpu_custom_call.1} parent=5 // pred_check_branch
        %182 = sbr.rel (%p179) target = $region32
      $region31: #{tpu_custom_call.1} parent=5 // pred_region
        %s183 = ssub.s32 %s12, 1
        %s184 = smul.u32 8, %s22
        %p185 = scmp.lt.s32.totalorder %s21, 1
        %s186 = scalar_select %p185, %s21, 1
        %p187 = scmp.lt.s32.totalorder %s184, 15
        %s188 = scalar_select %p187, %s184, 15
        %s189 = smul.addr %s186, 16
        %s190 = sadd.s32 %s188, %s189
        %s191 = smul.addr %s190, 8
        %s192 = scalar_lea.vmem %s0, %s191
        %p193 = pneg %p52
        %p194 = pneg %p49
        %s195 = smul.u32 8, %s22
        %p196 = scmp.lt.s32.totalorder %s21, 1
        %s197 = scalar_select %p196, %s21, 1
        %p198 = scmp.lt.s32.totalorder %s195, 15
        %s199 = scalar_select %p198, %s195, 15
        %s200 = smul.addr %s197, 16
        %s201 = sadd.s32 %s199, %s200
        %s202 = smul.addr %s201, 8
        %s203 = scalar_lea.vmem %s1, %s202
        %p204 = pneg %p80
        %p205 = pneg %p77
        %p206 = pneg %p101
        %p207 = pneg %p98
        %p208 = pneg %p129
        %p209 = pneg %p126
        %s210 = sand.u32 %s116, 1
        %s211 = scalar_lea.sflag [#allocation3], %s210
        %s212 = sand.u32 %s116, 1
        %s213 = smul.addr %s212, 64
        %s214 = scalar_lea.vmem [#allocation2], %s213
        %s215 = smul.u32 8, %s22
        %p216 = scmp.lt.s32.totalorder %s21, 1
        %s217 = scalar_select %p216, %s21, 1
        %p218 = scmp.lt.s32.totalorder %s215, 15
        %s219 = scalar_select %p218, %s215, 15
        %s220 = smul.addr %s217, 16
        %s221 = sadd.s32 %s219, %s220
        %s222 = smul.addr %s221, 8
        %s223 = scalar_lea.vmem %s0, %s222
        %s224 = smul.u32 8, %s22
        %s225 = smul.u32 8, %s22
        %p226 = scmp.lt.s32.totalorder %s21, 1
        %s227 = scalar_select %p226, %s21, 1
        %p228 = scmp.lt.s32.totalorder %s225, 15
        %s229 = scalar_select %p228, %s225, 15
        %s230 = smul.addr %s227, 16
        %s231 = sadd.s32 %s229, %s230
        %s232 = smul.addr %s231, 8
        %s233 = scalar_lea.vmem %s1, %s232
        %s234 = smul.u32 8, %s22
        %s235 = smul.u32 8, %s22
        %v236 = vld [vmem:[%s233] sm:$0xff]
        %v237 = vld [vmem:[%s233 + $0x8] sm:$0xff]
        %v238 = vld [vmem:[%s233 + $0x10] sm:$0xff]
        %v239 = vld [vmem:[%s233 + $0x18] sm:$0xff]
        %v240 = vld [vmem:[%s233 + $0x20] sm:$0xff]
        %v241 = vld [vmem:[%s233 + $0x28] sm:$0xff]
        %v242 = vld [vmem:[%s233 + $0x30] sm:$0xff]
        %v243 = vld [vmem:[%s233 + $0x38] sm:$0xff]
        %v244 = vxor.u32 %v236, 2147483648
        %v245 = vxor.u32 %v237, 2147483648
        %v246 = vxor.u32 %v238, 2147483648
        %v247 = vxor.u32 %v239, 2147483648
        %v248 = vxor.u32 %v240, 2147483648
        %v249 = vxor.u32 %v241, 2147483648
        %v250 = vxor.u32 %v242, 2147483648
        %v251 = vxor.u32 %v243, 2147483648
        %v252 = vmul.f32 %v244, 1.442695
        %v253 = vpow.pop %v252
        %v254 = vmul.f32 %v245, 1.442695
        %v255 = vpow.pop %v254
        %v256 = vmul.f32 %v246, 1.442695
        %v257 = vpow.pop %v256
        %v258 = vmul.f32 %v247, 1.442695
        %v259 = vpow.pop %v258
        %v260 = vmul.f32 %v248, 1.442695
        %v261 = vpow.pop %v260
        %v262 = vmul.f32 %v249, 1.442695
        %v263 = vpow.pop %v262
        %v264 = vmul.f32 %v250, 1.442695
        %v265 = vpow.pop %v264
        %v266 = vmul.f32 %v251, 1.442695
        %v267 = vpow.pop %v266
        %v268 = vadd.f32 %v253, 1.0
        %v269 = vadd.f32 %v255, 1.0
        %v270 = vadd.f32 %v257, 1.0
        %v271 = vadd.f32 %v259, 1.0
        %v272 = vadd.f32 %v261, 1.0
        %v273 = vadd.f32 %v263, 1.0
        %v274 = vadd.f32 %v265, 1.0
        %v275 = vadd.f32 %v267, 1.0
        %v276 = vrcp.pop %v268
        %v277 = vmul.f32 %v268, %v276
        %v278 = vsub.f32 1.0, %v277
        %v279 = vmul.f32 %v276, %v278
        %v280 = vadd.f32 %v276, %v279
        %vm281 = vweird.f32 %v268
        %vm282 = vweird.f32 %v276
        %vm283 = vmor %vm281, %vm282
        %v284 = vsel %vm283, %v276, %v280
        %v285 = vand.u32 2147483647, %v268
        %vm286 = vcmp.eq.f32.partialorder %v285, 8.507059e+37
        %v287 = vand.u32 %v268, 2147483648
        %v288 = vor.u32 1.1754944e-38, %v287
        %v289 = vsel %vm286, %v288, %v284
        %v290 = vmul.f32 1.0, %v289
        %v291 = vrcp.pop %v269
        %v292 = vmul.f32 %v269, %v291
        %v293 = vsub.f32 1.0, %v292
        %v294 = vmul.f32 %v291, %v293
        %v295 = vadd.f32 %v291, %v294
        %vm296 = vweird.f32 %v269
        %vm297 = vweird.f32 %v291
        %vm298 = vmor %vm296, %vm297
        %v299 = vsel %vm298, %v291, %v295
        %v300 = vand.u32 2147483647, %v269
        %vm301 = vcmp.eq.f32.partialorder %v300, 8.507059e+37
        %v302 = vand.u32 %v269, 2147483648
        %v303 = vor.u32 1.1754944e-38, %v302
        %v304 = vsel %vm301, %v303, %v299
        %v305 = vmul.f32 1.0, %v304
        %v306 = vrcp.pop %v270
        %v307 = vmul.f32 %v270, %v306
        %v308 = vsub.f32 1.0, %v307
        %v309 = vmul.f32 %v306, %v308
        %v310 = vadd.f32 %v306, %v309
        %vm311 = vweird.f32 %v270
        %vm312 = vweird.f32 %v306
        %vm313 = vmor %vm311, %vm312
        %v314 = vsel %vm313, %v306, %v310
        %v315 = vand.u32 2147483647, %v270
        %vm316 = vcmp.eq.f32.partialorder %v315, 8.507059e+37
        %v317 = vand.u32 %v270, 2147483648
        %v318 = vor.u32 1.1754944e-38, %v317
        %v319 = vsel %vm316, %v318, %v314
        %v320 = vmul.f32 1.0, %v319
        %v321 = vrcp.pop %v271
        %v322 = vmul.f32 %v271, %v321
        %v323 = vsub.f32 1.0, %v322
        %v324 = vmul.f32 %v321, %v323
        %v325 = vadd.f32 %v321, %v324
        %vm326 = vweird.f32 %v271
        %vm327 = vweird.f32 %v321
        %vm328 = vmor %vm326, %vm327
        %v329 = vsel %vm328, %v321, %v325
        %v330 = vand.u32 2147483647, %v271
        %vm331 = vcmp.eq.f32.partialorder %v330, 8.507059e+37
        %v332 = vand.u32 %v271, 2147483648
        %v333 = vor.u32 1.1754944e-38, %v332
        %v334 = vsel %vm331, %v333, %v329
        %v335 = vmul.f32 1.0, %v334
        %v336 = vrcp.pop %v272
        %v337 = vmul.f32 %v272, %v336
        %v338 = vsub.f32 1.0, %v337
        %v339 = vmul.f32 %v336, %v338
        %v340 = vadd.f32 %v336, %v339
        %vm341 = vweird.f32 %v272
        %vm342 = vweird.f32 %v336
        %vm343 = vmor %vm341, %vm342
        %v344 = vsel %vm343, %v336, %v340
        %v345 = vand.u32 2147483647, %v272
        %vm346 = vcmp.eq.f32.partialorder %v345, 8.507059e+37
        %v347 = vand.u32 %v272, 2147483648
        %v348 = vor.u32 1.1754944e-38, %v347
        %v349 = vsel %vm346, %v348, %v344
        %v350 = vmul.f32 1.0, %v349
        %v351 = vrcp.pop %v273
        %v352 = vmul.f32 %v273, %v351
        %v353 = vsub.f32 1.0, %v352
        %v354 = vmul.f32 %v351, %v353
        %v355 = vadd.f32 %v351, %v354
        %vm356 = vweird.f32 %v273
        %vm357 = vweird.f32 %v351
        %vm358 = vmor %vm356, %vm357
        %v359 = vsel %vm358, %v351, %v355
        %v360 = vand.u32 2147483647, %v273
        %vm361 = vcmp.eq.f32.partialorder %v360, 8.507059e+37
        %v362 = vand.u32 %v273, 2147483648
        %v363 = vor.u32 1.1754944e-38, %v362
        %v364 = vsel %vm361, %v363, %v359
        %v365 = vmul.f32 1.0, %v364
        %v366 = vrcp.pop %v274
        %v367 = vmul.f32 %v274, %v366
        %v368 = vsub.f32 1.0, %v367
        %v369 = vmul.f32 %v366, %v368
        %v370 = vadd.f32 %v366, %v369
        %vm371 = vweird.f32 %v274
        %vm372 = vweird.f32 %v366
        %vm373 = vmor %vm371, %vm372
        %v374 = vsel %vm373, %v366, %v370
        %v375 = vand.u32 2147483647, %v274
        %vm376 = vcmp.eq.f32.partialorder %v375, 8.507059e+37
        %v377 = vand.u32 %v274, 2147483648
        %v378 = vor.u32 1.1754944e-38, %v377
        %v379 = vsel %vm376, %v378, %v374
        %v380 = vmul.f32 1.0, %v379
        %v381 = vrcp.pop %v275
        %v382 = vmul.f32 %v275, %v381
        %v383 = vsub.f32 1.0, %v382
        %v384 = vmul.f32 %v381, %v383
        %v385 = vadd.f32 %v381, %v384
        %vm386 = vweird.f32 %v275
        %vm387 = vweird.f32 %v381
        %vm388 = vmor %vm386, %vm387
        %v389 = vsel %vm388, %v381, %v385
        %v390 = vand.u32 2147483647, %v275
        %vm391 = vcmp.eq.f32.partialorder %v390, 8.507059e+37
        %v392 = vand.u32 %v275, 2147483648
        %v393 = vor.u32 1.1754944e-38, %v392
        %v394 = vsel %vm391, %v393, %v389
        %v395 = vmul.f32 1.0, %v394
        %404 = vrot.lane.b32.xlu0 %v290, 127
        %v405 = vpop.permute.xlu0 %404
        %406 = vrot.lane.b32.xlu0 %v305, 127
        %v407 = vpop.permute.xlu0 %406
        %408 = vrot.lane.b32.xlu0 %v320, 127
        %v409 = vpop.permute.xlu0 %408
        %410 = vrot.lane.b32.xlu0 %v335, 127
        %v411 = vpop.permute.xlu0 %410
        %412 = vrot.lane.b32.xlu0 %v350, 127
        %v413 = vpop.permute.xlu0 %412
        %414 = vrot.lane.b32.xlu0 %v365, 127
        %v415 = vpop.permute.xlu0 %414
        %416 = vrot.lane.b32.xlu0 %v380, 127
        %v417 = vpop.permute.xlu0 %416
        %418 = vrot.lane.b32.xlu0 %v395, 127
        %v419 = vpop.permute.xlu0 %418
        %vm428 = vcmask 1039360
        %v429 = vsel %vm428, %v405, 0.0
        %v430 = vsel %vm428, %v407, 0.0
        %v431 = vsel %vm428, %v409, 0.0
        %v432 = vsel %vm428, %v411, 0.0
        %v433 = vsel %vm428, %v413, 0.0
        %v434 = vsel %vm428, %v415, 0.0
        %v435 = vsel %vm428, %v417, 0.0
        %v436 = vsel %vm428, %v419, 0.0
        %v437 = vadd.f32 %v290, %v429
        %v438 = vadd.f32 %v305, %v430
        %v439 = vadd.f32 %v320, %v431
        %v440 = vadd.f32 %v335, %v432
        %v441 = vadd.f32 %v350, %v433
        %v442 = vadd.f32 %v365, %v434
        %v443 = vadd.f32 %v380, %v435
        %v444 = vadd.f32 %v395, %v436
        %453 = vrot.lane.b32.xlu0 %v437, 126
        %v454 = vpop.permute.xlu0 %453
        %455 = vrot.lane.b32.xlu0 %v438, 126
        %v456 = vpop.permute.xlu0 %455
        %457 = vrot.lane.b32.xlu0 %v439, 126
        %v458 = vpop.permute.xlu0 %457
        %459 = vrot.lane.b32.xlu0 %v440, 126
        %v460 = vpop.permute.xlu0 %459
        %461 = vrot.lane.b32.xlu0 %v441, 126
        %v462 = vpop.permute.xlu0 %461
        %463 = vrot.lane.b32.xlu0 %v442, 126
        %v464 = vpop.permute.xlu0 %463
        %465 = vrot.lane.b32.xlu0 %v443, 126
        %v466 = vpop.permute.xlu0 %465
        %467 = vrot.lane.b32.xlu0 %v444, 126
        %v468 = vpop.permute.xlu0 %467
        %vm477 = vcmask 1031168
        %v478 = vsel %vm477, %v454, 0.0
        %v479 = vsel %vm477, %v456, 0.0
        %v480 = vsel %vm477, %v458, 0.0
        %v481 = vsel %vm477, %v460, 0.0
        %v482 = vsel %vm477, %v462, 0.0
        %v483 = vsel %vm477, %v464, 0.0
        %v484 = vsel %vm477, %v466, 0.0
        %v485 = vsel %vm477, %v468, 0.0
        %v486 = vadd.f32 %v437, %v478
        %v487 = vadd.f32 %v438, %v479
        %v488 = vadd.f32 %v439, %v480
        %v489 = vadd.f32 %v440, %v481
        %v490 = vadd.f32 %v441, %v482
        %v491 = vadd.f32 %v442, %v483
        %v492 = vadd.f32 %v443, %v484
        %v493 = vadd.f32 %v444, %v485
        %502 = vrot.lane.b32.xlu0 %v486, 124
        %v503 = vpop.permute.xlu0 %502
        %504 = vrot.lane.b32.xlu0 %v487, 124
        %v505 = vpop.permute.xlu0 %504
        %506 = vrot.lane.b32.xlu0 %v488, 124
        %v507 = vpop.permute.xlu0 %506
        %508 = vrot.lane.b32.xlu0 %v489, 124
        %v509 = vpop.permute.xlu0 %508
        %510 = vrot.lane.b32.xlu0 %v490, 124
        %v511 = vpop.permute.xlu0 %510
        %512 = vrot.lane.b32.xlu0 %v491, 124
        %v513 = vpop.permute.xlu0 %512
        %514 = vrot.lane.b32.xlu0 %v492, 124
        %v515 = vpop.permute.xlu0 %514
        %516 = vrot.lane.b32.xlu0 %v493, 124
        %v517 = vpop.permute.xlu0 %516
        %vm526 = vcmask 1014784
        %v527 = vsel %vm526, %v503, 0.0
        %v528 = vsel %vm526, %v505, 0.0
        %v529 = vsel %vm526, %v507, 0.0
        %v530 = vsel %vm526, %v509, 0.0
        %v531 = vsel %vm526, %v511, 0.0
        %v532 = vsel %vm526, %v513, 0.0
        %v533 = vsel %vm526, %v515, 0.0
        %v534 = vsel %vm526, %v517, 0.0
        %v535 = vadd.f32 %v486, %v527
        %v536 = vadd.f32 %v487, %v528
        %v537 = vadd.f32 %v488, %v529
        %v538 = vadd.f32 %v489, %v530
        %v539 = vadd.f32 %v490, %v531
        %v540 = vadd.f32 %v491, %v532
        %v541 = vadd.f32 %v492, %v533
        %v542 = vadd.f32 %v493, %v534
        %551 = vrot.lane.b32.xlu0 %v535, 120
        %v552 = vpop.permute.xlu0 %551
        %553 = vrot.lane.b32.xlu0 %v536, 120
        %v554 = vpop.permute.xlu0 %553
        %555 = vrot.lane.b32.xlu0 %v537, 120
        %v556 = vpop.permute.xlu0 %555
        %557 = vrot.lane.b32.xlu0 %v538, 120
        %v558 = vpop.permute.xlu0 %557
        %559 = vrot.lane.b32.xlu0 %v539, 120
        %v560 = vpop.permute.xlu0 %559
        %561 = vrot.lane.b32.xlu0 %v540, 120
        %v562 = vpop.permute.xlu0 %561
        %563 = vrot.lane.b32.xlu0 %v541, 120
        %v564 = vpop.permute.xlu0 %563
        %565 = vrot.lane.b32.xlu0 %v542, 120
        %v566 = vpop.permute.xlu0 %565
        %vm575 = vcmask 982016
        %v576 = vsel %vm575, %v552, 0.0
        %v577 = vsel %vm575, %v554, 0.0
        %v578 = vsel %vm575, %v556, 0.0
        %v579 = vsel %vm575, %v558, 0.0
        %v580 = vsel %vm575, %v560, 0.0
        %v581 = vsel %vm575, %v562, 0.0
        %v582 = vsel %vm575, %v564, 0.0
        %v583 = vsel %vm575, %v566, 0.0
        %v584 = vadd.f32 %v535, %v576
        %v585 = vadd.f32 %v536, %v577
        %v586 = vadd.f32 %v537, %v578
        %v587 = vadd.f32 %v538, %v579
        %v588 = vadd.f32 %v539, %v580
        %v589 = vadd.f32 %v540, %v581
        %v590 = vadd.f32 %v541, %v582
        %v591 = vadd.f32 %v542, %v583
        %600 = vrot.lane.b32.xlu0 %v584, 112
        %v601 = vpop.permute.xlu0 %600
        %602 = vrot.lane.b32.xlu0 %v585, 112
        %v603 = vpop.permute.xlu0 %602
        %604 = vrot.lane.b32.xlu0 %v586, 112
        %v605 = vpop.permute.xlu0 %604
        %606 = vrot.lane.b32.xlu0 %v587, 112
        %v607 = vpop.permute.xlu0 %606
        %608 = vrot.lane.b32.xlu0 %v588, 112
        %v609 = vpop.permute.xlu0 %608
        %610 = vrot.lane.b32.xlu0 %v589, 112
        %v611 = vpop.permute.xlu0 %610
        %612 = vrot.lane.b32.xlu0 %v590, 112
        %v613 = vpop.permute.xlu0 %612
        %614 = vrot.lane.b32.xlu0 %v591, 112
        %v615 = vpop.permute.xlu0 %614
        %vm624 = vcmask 916480
        %v625 = vsel %vm624, %v601, 0.0
        %v626 = vsel %vm624, %v603, 0.0
        %v627 = vsel %vm624, %v605, 0.0
        %v628 = vsel %vm624, %v607, 0.0
        %v629 = vsel %vm624, %v609, 0.0
        %v630 = vsel %vm624, %v611, 0.0
        %v631 = vsel %vm624, %v613, 0.0
        %v632 = vsel %vm624, %v615, 0.0
        %v633 = vadd.f32 %v584, %v625
        %v634 = vadd.f32 %v585, %v626
        %v635 = vadd.f32 %v586, %v627
        %v636 = vadd.f32 %v587, %v628
        %v637 = vadd.f32 %v588, %v629
        %v638 = vadd.f32 %v589, %v630
        %v639 = vadd.f32 %v590, %v631
        %v640 = vadd.f32 %v591, %v632
        %649 = vrot.lane.b32.xlu0 %v633, 96
        %v650 = vpop.permute.xlu0 %649
        %651 = vrot.lane.b32.xlu0 %v634, 96
        %v652 = vpop.permute.xlu0 %651
        %653 = vrot.lane.b32.xlu0 %v635, 96
        %v654 = vpop.permute.xlu0 %653
        %655 = vrot.lane.b32.xlu0 %v636, 96
        %v656 = vpop.permute.xlu0 %655
        %657 = vrot.lane.b32.xlu0 %v637, 96
        %v658 = vpop.permute.xlu0 %657
        %659 = vrot.lane.b32.xlu0 %v638, 96
        %v660 = vpop.permute.xlu0 %659
        %661 = vrot.lane.b32.xlu0 %v639, 96
        %v662 = vpop.permute.xlu0 %661
        %663 = vrot.lane.b32.xlu0 %v640, 96
        %v664 = vpop.permute.xlu0 %663
        %vm673 = vcmask 785408
        %v674 = vsel %vm673, %v650, 0.0
        %v675 = vsel %vm673, %v652, 0.0
        %v676 = vsel %vm673, %v654, 0.0
        %v677 = vsel %vm673, %v656, 0.0
        %v678 = vsel %vm673, %v658, 0.0
        %v679 = vsel %vm673, %v660, 0.0
        %v680 = vsel %vm673, %v662, 0.0
        %v681 = vsel %vm673, %v664, 0.0
        %v682 = vadd.f32 %v633, %v674
        %v683 = vadd.f32 %v634, %v675
        %v684 = vadd.f32 %v635, %v676
        %v685 = vadd.f32 %v636, %v677
        %v686 = vadd.f32 %v637, %v678
        %v687 = vadd.f32 %v638, %v679
        %v688 = vadd.f32 %v639, %v680
        %v689 = vadd.f32 %v640, %v681
        %698 = vrot.lane.b32.xlu0 %v682, 64
        %v699 = vpop.permute.xlu0 %698
        %700 = vrot.lane.b32.xlu0 %v683, 64
        %v701 = vpop.permute.xlu0 %700
        %702 = vrot.lane.b32.xlu0 %v684, 64
        %v703 = vpop.permute.xlu0 %702
        %704 = vrot.lane.b32.xlu0 %v685, 64
        %v705 = vpop.permute.xlu0 %704
        %706 = vrot.lane.b32.xlu0 %v686, 64
        %v707 = vpop.permute.xlu0 %706
        %708 = vrot.lane.b32.xlu0 %v687, 64
        %v709 = vpop.permute.xlu0 %708
        %710 = vrot.lane.b32.xlu0 %v688, 64
        %v711 = vpop.permute.xlu0 %710
        %712 = vrot.lane.b32.xlu0 %v689, 64
        %v713 = vpop.permute.xlu0 %712
        %vm722 = vcmask 523264
        %v723 = vsel %vm722, %v699, 0.0
        %v724 = vsel %vm722, %v701, 0.0
        %v725 = vsel %vm722, %v703, 0.0
        %v726 = vsel %vm722, %v705, 0.0
        %v727 = vsel %vm722, %v707, 0.0
        %v728 = vsel %vm722, %v709, 0.0
        %v729 = vsel %vm722, %v711, 0.0
        %v730 = vsel %vm722, %v713, 0.0
        %v731 = vadd.f32 %v682, %v723
        %v732 = vadd.f32 %v683, %v724
        %v733 = vadd.f32 %v684, %v725
        %v734 = vadd.f32 %v685, %v726
        %v735 = vadd.f32 %v686, %v727
        %v736 = vadd.f32 %v687, %v728
        %v737 = vadd.f32 %v688, %v729
        %v738 = vadd.f32 %v689, %v730
        %v739 = vmin.f32 %v731, 7.0
        %v740 = vmin.f32 %v732, 7.0
        %v741 = vmin.f32 %v733, 7.0
        %v742 = vmin.f32 %v734, 7.0
        %v743 = vmin.f32 %v735, 7.0
        %v744 = vmin.f32 %v736, 7.0
        %v745 = vmin.f32 %v737, 7.0
        %v746 = vmin.f32 %v738, 7.0
        %v747 = vld [vmem:[%s223] sm:$0xff]
        %v748 = vld [vmem:[%s223 + $0x8] sm:$0xff]
        %v749 = vld [vmem:[%s223 + $0x10] sm:$0xff]
        %v750 = vld [vmem:[%s223 + $0x18] sm:$0xff]
        %v751 = vld [vmem:[%s223 + $0x20] sm:$0xff]
        %v752 = vld [vmem:[%s223 + $0x28] sm:$0xff]
        %v753 = vld [vmem:[%s223 + $0x30] sm:$0xff]
        %v754 = vld [vmem:[%s223 + $0x38] sm:$0xff]
        %v755 = vld [vmem:[%s2] sm:$0xff]
        %v756 = vld [vmem:[%s2 + $0x8] sm:$0xff]
        %v757 = vld [vmem:[%s2 + $0x10] sm:$0xff]
        %v758 = vld [vmem:[%s2 + $0x18] sm:$0xff]
        %vm759 = vcmask 261120
        %v761 = vsel %vm759, %v747, 0
        %v764 = vsel %vm759, %v748, 0
        %v767 = vsel %vm759, %v749, 0
        %v770 = vsel %vm759, %v750, 0
        %v773 = vsel %vm759, %v751, 0
        %v776 = vsel %vm759, %v752, 0
        %v779 = vsel %vm759, %v753, 0
        %v782 = vsel %vm759, %v754, 0
        %784 = vmatpush.msra.mxu0 0.0
        %785 = vmatpush.msra.mxu0 0.0
        %786 = vmatpush.msra.mxu0 0.0
        %787 = vmatpush.msra.mxu0 0.0
        %788 = vmatpush.msra.mxu0 0.0
        %789 = vmatpush.msra.mxu0 0.0
        %790 = vmatpush.msra.mxu0 0.0
        %791 = vmatpush.msra.mxu0 0.0
        %792 = vmatpush.msra.mxu0 0.0
        %793 = vmatpush.msra.mxu0 0.0
        %794 = vmatpush.msra.mxu0 0.0
        %795 = vmatpush.msra.mxu0 0.0
        %v796 = vand.u32 %v758, 4294901760
        %797 = vmatpush.msra.mxu0 %v796
        %v798 = vand.u32 %v757, 4294901760
        %799 = vmatpush.msra.mxu0 %v798
        %v800 = vand.u32 %v756, 4294901760
        %801 = vmatpush.msra.mxu0 %v800
        %v802 = vand.u32 %v755, 4294901760
        %803 = vmatpush.msra.mxu0 %v802
        %v804 = vand.u32 %v761, 4294901760
        %v805 = vsub.f32 %v761, %v804
        %v806 = vand.u32 %v805, 4294901760
        %v807 = vsub.f32 %v805, %v806
        %v808 = vand.u32 %v807, 4294901760
        %809 = vmatmul.f32.gmra.mxu0 %v808
        %v810 = vpop.f32.mrf.mxu0
        %v811 = vadd.f32 0.0, %v810
        %v812 = vand.u32 %v764, 4294901760
        %v813 = vsub.f32 %v764, %v812
        %v814 = vand.u32 %v813, 4294901760
        %v815 = vsub.f32 %v813, %v814
        %v816 = vand.u32 %v815, 4294901760
        %817 = vmatmul.f32.gmra.mxu0 %v816
        %v818 = vpop.f32.mrf.mxu0
        %v819 = vadd.f32 0.0, %v818
        %v820 = vand.u32 %v767, 4294901760
        %v821 = vsub.f32 %v767, %v820
        %v822 = vand.u32 %v821, 4294901760
        %v823 = vsub.f32 %v821, %v822
        %v824 = vand.u32 %v823, 4294901760
        %825 = vmatmul.f32.gmra.mxu0 %v824
        %v826 = vpop.f32.mrf.mxu0
        %v827 = vadd.f32 0.0, %v826
        %v828 = vand.u32 %v770, 4294901760
        %v829 = vsub.f32 %v770, %v828
        %v830 = vand.u32 %v829, 4294901760
        %v831 = vsub.f32 %v829, %v830
        %v832 = vand.u32 %v831, 4294901760
        %833 = vmatmul.f32.gmra.mxu0 %v832
        %v834 = vpop.f32.mrf.mxu0
        %v835 = vadd.f32 0.0, %v834
        %v836 = vand.u32 %v773, 4294901760
        %v837 = vsub.f32 %v773, %v836
        %v838 = vand.u32 %v837, 4294901760
        %v839 = vsub.f32 %v837, %v838
        %v840 = vand.u32 %v839, 4294901760
        %841 = vmatmul.f32.gmra.mxu0 %v840
        %v842 = vpop.f32.mrf.mxu0
        %v843 = vadd.f32 0.0, %v842
        %v844 = vand.u32 %v776, 4294901760
        %v845 = vsub.f32 %v776, %v844
        %v846 = vand.u32 %v845, 4294901760
        %v847 = vsub.f32 %v845, %v846
        %v848 = vand.u32 %v847, 4294901760
        %849 = vmatmul.f32.gmra.mxu0 %v848
        %v850 = vpop.f32.mrf.mxu0
        %v851 = vadd.f32 0.0, %v850
        %v852 = vand.u32 %v779, 4294901760
        %v853 = vsub.f32 %v779, %v852
        %v854 = vand.u32 %v853, 4294901760
        %v855 = vsub.f32 %v853, %v854
        %v856 = vand.u32 %v855, 4294901760
        %857 = vmatmul.f32.gmra.mxu0 %v856
        %v858 = vpop.f32.mrf.mxu0
        %v859 = vadd.f32 0.0, %v858
        %v860 = vand.u32 %v782, 4294901760
        %v861 = vsub.f32 %v782, %v860
        %v862 = vand.u32 %v861, 4294901760
        %v863 = vsub.f32 %v861, %v862
        %v864 = vand.u32 %v863, 4294901760
        %865 = vmatmul.f32.gmra.mxu0 %v864
        %v866 = vpop.f32.mrf.mxu0
        %v867 = vadd.f32 0.0, %v866
        %868 = vdwg.mxu0
        %869 = vmatpush.msra.mxu0 0.0
        %870 = vmatpush.msra.mxu0 0.0
        %871 = vmatpush.msra.mxu0 0.0
        %872 = vmatpush.msra.mxu0 0.0
        %873 = vmatpush.msra.mxu0 0.0
        %874 = vmatpush.msra.mxu0 0.0
        %875 = vmatpush.msra.mxu0 0.0
        %876 = vmatpush.msra.mxu0 0.0
        %877 = vmatpush.msra.mxu0 0.0
        %878 = vmatpush.msra.mxu0 0.0
        %879 = vmatpush.msra.mxu0 0.0
        %880 = vmatpush.msra.mxu0 0.0
        %v881 = vand.u32 %v758, 4294901760
        %v882 = vsub.f32 %v758, %v881
        %v883 = vand.u32 %v882, 4294901760
        %v884 = vsub.f32 %v882, %v883
        %v885 = vand.u32 %v884, 4294901760
        %886 = vmatpush.msra.mxu0 %v885
        %v887 = vand.u32 %v757, 4294901760
        %v888 = vsub.f32 %v757, %v887
        %v889 = vand.u32 %v888, 4294901760
        %v890 = vsub.f32 %v888, %v889
        %v891 = vand.u32 %v890, 4294901760
        %892 = vmatpush.msra.mxu0 %v891
        %v893 = vand.u32 %v756, 4294901760
        %v894 = vsub.f32 %v756, %v893
        %v895 = vand.u32 %v894, 4294901760
        %v896 = vsub.f32 %v894, %v895
        %v897 = vand.u32 %v896, 4294901760
        %898 = vmatpush.msra.mxu0 %v897
        %v899 = vand.u32 %v755, 4294901760
        %v900 = vsub.f32 %v755, %v899
        %v901 = vand.u32 %v900, 4294901760
        %v902 = vsub.f32 %v900, %v901
        %v903 = vand.u32 %v902, 4294901760
        %904 = vmatpush.msra.mxu0 %v903
        %v905 = vand.u32 %v761, 4294901760
        %906 = vmatmul.f32.gmra.mxu0 %v905
        %v907 = vpop.f32.mrf.mxu0
        %v908 = vadd.f32 %v811, %v907
        %v909 = vand.u32 %v764, 4294901760
        %910 = vmatmul.f32.gmra.mxu0 %v909
        %v911 = vpop.f32.mrf.mxu0
        %v912 = vadd.f32 %v819, %v911
        %v913 = vand.u32 %v767, 4294901760
        %914 = vmatmul.f32.gmra.mxu0 %v913
        %v915 = vpop.f32.mrf.mxu0
        %v916 = vadd.f32 %v827, %v915
        %v917 = vand.u32 %v770, 4294901760
        %918 = vmatmul.f32.gmra.mxu0 %v917
        %v919 = vpop.f32.mrf.mxu0
        %v920 = vadd.f32 %v835, %v919
        %v921 = vand.u32 %v773, 4294901760
        %922 = vmatmul.f32.gmra.mxu0 %v921
        %v923 = vpop.f32.mrf.mxu0
        %v924 = vadd.f32 %v843, %v923
        %v925 = vand.u32 %v776, 4294901760
        %926 = vmatmul.f32.gmra.mxu0 %v925
        %v927 = vpop.f32.mrf.mxu0
        %v928 = vadd.f32 %v851, %v927
        %v929 = vand.u32 %v779, 4294901760
        %930 = vmatmul.f32.gmra.mxu0 %v929
        %v931 = vpop.f32.mrf.mxu0
        %v932 = vadd.f32 %v859, %v931
        %v933 = vand.u32 %v782, 4294901760
        %934 = vmatmul.f32.gmra.mxu0 %v933
        %v935 = vpop.f32.mrf.mxu0
        %v936 = vadd.f32 %v867, %v935
        %937 = vdwg.mxu0
        %938 = vmatpush.msra.mxu0 0.0
        %939 = vmatpush.msra.mxu0 0.0
        %940 = vmatpush.msra.mxu0 0.0
        %941 = vmatpush.msra.mxu0 0.0
        %942 = vmatpush.msra.mxu0 0.0
        %943 = vmatpush.msra.mxu0 0.0
        %944 = vmatpush.msra.mxu0 0.0
        %945 = vmatpush.msra.mxu0 0.0
        %946 = vmatpush.msra.mxu0 0.0
        %947 = vmatpush.msra.mxu0 0.0
        %948 = vmatpush.msra.mxu0 0.0
        %949 = vmatpush.msra.mxu0 0.0
        %v950 = vand.u32 %v758, 4294901760
        %v951 = vsub.f32 %v758, %v950
        %952 = vmatpush.msra.mxu0 %v951
        %v953 = vand.u32 %v757, 4294901760
        %v954 = vsub.f32 %v757, %v953
        %955 = vmatpush.msra.mxu0 %v954
        %v956 = vand.u32 %v756, 4294901760
        %v957 = vsub.f32 %v756, %v956
        %958 = vmatpush.msra.mxu0 %v957
        %v959 = vand.u32 %v755, 4294901760
        %v960 = vsub.f32 %v755, %v959
        %961 = vmatpush.msra.mxu0 %v960
        %v962 = vand.u32 %v761, 4294901760
        %v963 = vsub.f32 %v761, %v962
        %964 = vmatmul.f32.gmra.mxu0 %v963
        %v965 = vpop.f32.mrf.mxu0
        %v966 = vadd.f32 %v908, %v965
        %v967 = vand.u32 %v764, 4294901760
        %v968 = vsub.f32 %v764, %v967
        %969 = vmatmul.f32.gmra.mxu0 %v968
        %v970 = vpop.f32.mrf.mxu0
        %v971 = vadd.f32 %v912, %v970
        %v972 = vand.u32 %v767, 4294901760
        %v973 = vsub.f32 %v767, %v972
        %974 = vmatmul.f32.gmra.mxu0 %v973
        %v975 = vpop.f32.mrf.mxu0
        %v976 = vadd.f32 %v916, %v975
        %v977 = vand.u32 %v770, 4294901760
        %v978 = vsub.f32 %v770, %v977
        %979 = vmatmul.f32.gmra.mxu0 %v978
        %v980 = vpop.f32.mrf.mxu0
        %v981 = vadd.f32 %v920, %v980
        %v982 = vand.u32 %v773, 4294901760
        %v983 = vsub.f32 %v773, %v982
        %984 = vmatmul.f32.gmra.mxu0 %v983
        %v985 = vpop.f32.mrf.mxu0
        %v986 = vadd.f32 %v924, %v985
        %v987 = vand.u32 %v776, 4294901760
        %v988 = vsub.f32 %v776, %v987
        %989 = vmatmul.f32.gmra.mxu0 %v988
        %v990 = vpop.f32.mrf.mxu0
        %v991 = vadd.f32 %v928, %v990
        %v992 = vand.u32 %v779, 4294901760
        %v993 = vsub.f32 %v779, %v992
        %994 = vmatmul.f32.gmra.mxu0 %v993
        %v995 = vpop.f32.mrf.mxu0
        %v996 = vadd.f32 %v932, %v995
        %v997 = vand.u32 %v782, 4294901760
        %v998 = vsub.f32 %v782, %v997
        %999 = vmatmul.f32.gmra.mxu0 %v998
        %v1000 = vpop.f32.mrf.mxu0
        %v1001 = vadd.f32 %v936, %v1000
        %1002 = vdwg.mxu0
        %1003 = vmatpush.msra.mxu0 0.0
        %1004 = vmatpush.msra.mxu0 0.0
        %1005 = vmatpush.msra.mxu0 0.0
        %1006 = vmatpush.msra.mxu0 0.0
        %1007 = vmatpush.msra.mxu0 0.0
        %1008 = vmatpush.msra.mxu0 0.0
        %1009 = vmatpush.msra.mxu0 0.0
        %1010 = vmatpush.msra.mxu0 0.0
        %1011 = vmatpush.msra.mxu0 0.0
        %1012 = vmatpush.msra.mxu0 0.0
        %1013 = vmatpush.msra.mxu0 0.0
        %1014 = vmatpush.msra.mxu0 0.0
        %v1015 = vand.u32 %v758, 4294901760
        %1016 = vmatpush.msra.mxu0 %v1015
        %v1017 = vand.u32 %v757, 4294901760
        %1018 = vmatpush.msra.mxu0 %v1017
        %v1019 = vand.u32 %v756, 4294901760
        %1020 = vmatpush.msra.mxu0 %v1019
        %v1021 = vand.u32 %v755, 4294901760
        %1022 = vmatpush.msra.mxu0 %v1021
        %v1023 = vand.u32 %v761, 4294901760
        %v1024 = vsub.f32 %v761, %v1023
        %v1025 = vand.u32 %v1024, 4294901760
        %1026 = vmatmul.f32.gmra.mxu0 %v1025
        %v1027 = vpop.f32.mrf.mxu0
        %v1028 = vadd.f32 %v966, %v1027
        %v1029 = vand.u32 %v764, 4294901760
        %v1030 = vsub.f32 %v764, %v1029
        %v1031 = vand.u32 %v1030, 4294901760
        %1032 = vmatmul.f32.gmra.mxu0 %v1031
        %v1033 = vpop.f32.mrf.mxu0
        %v1034 = vadd.f32 %v971, %v1033
        %v1035 = vand.u32 %v767, 4294901760
        %v1036 = vsub.f32 %v767, %v1035
        %v1037 = vand.u32 %v1036, 4294901760
        %1038 = vmatmul.f32.gmra.mxu0 %v1037
        %v1039 = vpop.f32.mrf.mxu0
        %v1040 = vadd.f32 %v976, %v1039
        %v1041 = vand.u32 %v770, 4294901760
        %v1042 = vsub.f32 %v770, %v1041
        %v1043 = vand.u32 %v1042, 4294901760
        %1044 = vmatmul.f32.gmra.mxu0 %v1043
        %v1045 = vpop.f32.mrf.mxu0
        %v1046 = vadd.f32 %v981, %v1045
        %v1047 = vand.u32 %v773, 4294901760
        %v1048 = vsub.f32 %v773, %v1047
        %v1049 = vand.u32 %v1048, 4294901760
        %1050 = vmatmul.f32.gmra.mxu0 %v1049
        %v1051 = vpop.f32.mrf.mxu0
        %v1052 = vadd.f32 %v986, %v1051
        %v1053 = vand.u32 %v776, 4294901760
        %v1054 = vsub.f32 %v776, %v1053
        %v1055 = vand.u32 %v1054, 4294901760
        %1056 = vmatmul.f32.gmra.mxu0 %v1055
        %v1057 = vpop.f32.mrf.mxu0
        %v1058 = vadd.f32 %v991, %v1057
        %v1059 = vand.u32 %v779, 4294901760
        %v1060 = vsub.f32 %v779, %v1059
        %v1061 = vand.u32 %v1060, 4294901760
        %1062 = vmatmul.f32.gmra.mxu0 %v1061
        %v1063 = vpop.f32.mrf.mxu0
        %v1064 = vadd.f32 %v996, %v1063
        %v1065 = vand.u32 %v782, 4294901760
        %v1066 = vsub.f32 %v782, %v1065
        %v1067 = vand.u32 %v1066, 4294901760
        %1068 = vmatmul.f32.gmra.mxu0 %v1067
        %v1069 = vpop.f32.mrf.mxu0
        %v1070 = vadd.f32 %v1001, %v1069
        %1071 = vdwg.mxu0
        %1072 = vmatpush.msra.mxu0 0.0
        %1073 = vmatpush.msra.mxu0 0.0
        %1074 = vmatpush.msra.mxu0 0.0
        %1075 = vmatpush.msra.mxu0 0.0
        %1076 = vmatpush.msra.mxu0 0.0
        %1077 = vmatpush.msra.mxu0 0.0
        %1078 = vmatpush.msra.mxu0 0.0
        %1079 = vmatpush.msra.mxu0 0.0
        %1080 = vmatpush.msra.mxu0 0.0
        %1081 = vmatpush.msra.mxu0 0.0
        %1082 = vmatpush.msra.mxu0 0.0
        %1083 = vmatpush.msra.mxu0 0.0
        %v1084 = vand.u32 %v758, 4294901760
        %v1085 = vsub.f32 %v758, %v1084
        %v1086 = vand.u32 %v1085, 4294901760
        %1087 = vmatpush.msra.mxu0 %v1086
        %v1088 = vand.u32 %v757, 4294901760
        %v1089 = vsub.f32 %v757, %v1088
        %v1090 = vand.u32 %v1089, 4294901760
        %1091 = vmatpush.msra.mxu0 %v1090
        %v1092 = vand.u32 %v756, 4294901760
        %v1093 = vsub.f32 %v756, %v1092
        %v1094 = vand.u32 %v1093, 4294901760
        %1095 = vmatpush.msra.mxu0 %v1094
        %v1096 = vand.u32 %v755, 4294901760
        %v1097 = vsub.f32 %v755, %v1096
        %v1098 = vand.u32 %v1097, 4294901760
        %1099 = vmatpush.msra.mxu0 %v1098
        %v1100 = vand.u32 %v761, 4294901760
        %1101 = vmatmul.f32.gmra.mxu0 %v1100
        %v1102 = vpop.f32.mrf.mxu0
        %v1103 = vadd.f32 %v1028, %v1102
        %v1104 = vand.u32 %v764, 4294901760
        %1105 = vmatmul.f32.gmra.mxu0 %v1104
        %v1106 = vpop.f32.mrf.mxu0
        %v1107 = vadd.f32 %v1034, %v1106
        %v1108 = vand.u32 %v767, 4294901760
        %1109 = vmatmul.f32.gmra.mxu0 %v1108
        %v1110 = vpop.f32.mrf.mxu0
        %v1111 = vadd.f32 %v1040, %v1110
        %v1112 = vand.u32 %v770, 4294901760
        %1113 = vmatmul.f32.gmra.mxu0 %v1112
        %v1114 = vpop.f32.mrf.mxu0
        %v1115 = vadd.f32 %v1046, %v1114
        %v1116 = vand.u32 %v773, 4294901760
        %1117 = vmatmul.f32.gmra.mxu0 %v1116
        %v1118 = vpop.f32.mrf.mxu0
        %v1119 = vadd.f32 %v1052, %v1118
        %v1120 = vand.u32 %v776, 4294901760
        %1121 = vmatmul.f32.gmra.mxu0 %v1120
        %v1122 = vpop.f32.mrf.mxu0
        %v1123 = vadd.f32 %v1058, %v1122
        %v1124 = vand.u32 %v779, 4294901760
        %1125 = vmatmul.f32.gmra.mxu0 %v1124
        %v1126 = vpop.f32.mrf.mxu0
        %v1127 = vadd.f32 %v1064, %v1126
        %v1128 = vand.u32 %v782, 4294901760
        %1129 = vmatmul.f32.gmra.mxu0 %v1128
        %v1130 = vpop.f32.mrf.mxu0
        %v1131 = vadd.f32 %v1070, %v1130
        %1132 = vdwg.mxu0
        %1133 = vmatpush.msra.mxu0 0.0
        %1134 = vmatpush.msra.mxu0 0.0
        %1135 = vmatpush.msra.mxu0 0.0
        %1136 = vmatpush.msra.mxu0 0.0
        %1137 = vmatpush.msra.mxu0 0.0
        %1138 = vmatpush.msra.mxu0 0.0
        %1139 = vmatpush.msra.mxu0 0.0
        %1140 = vmatpush.msra.mxu0 0.0
        %1141 = vmatpush.msra.mxu0 0.0
        %1142 = vmatpush.msra.mxu0 0.0
        %1143 = vmatpush.msra.mxu0 0.0
        %1144 = vmatpush.msra.mxu0 0.0
        %v1145 = vand.u32 %v758, 4294901760
        %1146 = vmatpush.msra.mxu0 %v1145
        %v1147 = vand.u32 %v757, 4294901760
        %1148 = vmatpush.msra.mxu0 %v1147
        %v1149 = vand.u32 %v756, 4294901760
        %1150 = vmatpush.msra.mxu0 %v1149
        %v1151 = vand.u32 %v755, 4294901760
        %1152 = vmatpush.msra.mxu0 %v1151
        %v1153 = vand.u32 %v761, 4294901760
        %1154 = vmatmul.f32.gmra.mxu0 %v1153
        %v1155 = vpop.f32.mrf.mxu0
        %v1156 = vadd.f32 %v1103, %v1155
        %v1157 = vand.u32 %v764, 4294901760
        %1158 = vmatmul.f32.gmra.mxu0 %v1157
        %v1159 = vpop.f32.mrf.mxu0
        %v1160 = vadd.f32 %v1107, %v1159
        %v1161 = vand.u32 %v767, 4294901760
        %1162 = vmatmul.f32.gmra.mxu0 %v1161
        %v1163 = vpop.f32.mrf.mxu0
        %v1164 = vadd.f32 %v1111, %v1163
        %v1165 = vand.u32 %v770, 4294901760
        %1166 = vmatmul.f32.gmra.mxu0 %v1165
        %v1167 = vpop.f32.mrf.mxu0
        %v1168 = vadd.f32 %v1115, %v1167
        %v1169 = vand.u32 %v773, 4294901760
        %1170 = vmatmul.f32.gmra.mxu0 %v1169
        %v1171 = vpop.f32.mrf.mxu0
        %v1172 = vadd.f32 %v1119, %v1171
        %v1173 = vand.u32 %v776, 4294901760
        %1174 = vmatmul.f32.gmra.mxu0 %v1173
        %v1175 = vpop.f32.mrf.mxu0
        %v1176 = vadd.f32 %v1123, %v1175
        %v1177 = vand.u32 %v779, 4294901760
        %1178 = vmatmul.f32.gmra.mxu0 %v1177
        %v1179 = vpop.f32.mrf.mxu0
        %v1180 = vadd.f32 %v1127, %v1179
        %v1181 = vand.u32 %v782, 4294901760
        %1182 = vmatmul.f32.gmra.mxu0 %v1181
        %v1183 = vpop.f32.mrf.mxu0
        %v1184 = vadd.f32 %v1131, %v1183
        %1185 = vdwg.mxu0
        %v1186 = vand.u32 2147483647, %v739
        %v1187 = vand.u32 2147483647, %v740
        %v1188 = vand.u32 2147483647, %v741
        %v1189 = vand.u32 2147483647, %v742
        %v1190 = vand.u32 2147483647, %v743
        %v1191 = vand.u32 2147483647, %v744
        %v1192 = vand.u32 2147483647, %v745
        %v1193 = vand.u32 2147483647, %v746
        %v1194 = vsub.f32 1.0, %v1186
        %v1195 = vsub.f32 1.0, %v1187
        %v1196 = vsub.f32 1.0, %v1188
        %v1197 = vsub.f32 1.0, %v1189
        %v1198 = vsub.f32 1.0, %v1190
        %v1199 = vsub.f32 1.0, %v1191
        %v1200 = vsub.f32 1.0, %v1192
        %v1201 = vsub.f32 1.0, %v1193
        %v1202 = vmax.f32 %v1194, 0.0
        %v1203 = vmax.f32 %v1195, 0.0
        %v1204 = vmax.f32 %v1196, 0.0
        %v1205 = vmax.f32 %v1197, 0.0
        %v1206 = vmax.f32 %v1198, 0.0
        %v1207 = vmax.f32 %v1199, 0.0
        %v1208 = vmax.f32 %v1200, 0.0
        %v1209 = vmax.f32 %v1201, 0.0
        %1211 = vset.pattern.permute.xlu0 0
        %1212 = vperm.xlu0 %1211, %v1156
        %v1213 = vpop.permute.xlu0 %1212
        %1216 = vset.pattern.permute.xlu0 0
        %1217 = vperm.xlu0 %1216, %v1160
        %v1218 = vpop.permute.xlu0 %1217
        %1221 = vset.pattern.permute.xlu0 0
        %1222 = vperm.xlu0 %1221, %v1164
        %v1223 = vpop.permute.xlu0 %1222
        %1226 = vset.pattern.permute.xlu0 0
        %1227 = vperm.xlu0 %1226, %v1168
        %v1228 = vpop.permute.xlu0 %1227
        %1231 = vset.pattern.permute.xlu0 0
        %1232 = vperm.xlu0 %1231, %v1172
        %v1233 = vpop.permute.xlu0 %1232
        %1236 = vset.pattern.permute.xlu0 0
        %1237 = vperm.xlu0 %1236, %v1176
        %v1238 = vpop.permute.xlu0 %1237
        %1241 = vset.pattern.permute.xlu0 0
        %1242 = vperm.xlu0 %1241, %v1180
        %v1243 = vpop.permute.xlu0 %1242
        %1246 = vset.pattern.permute.xlu0 0
        %1247 = vperm.xlu0 %1246, %v1184
        %v1248 = vpop.permute.xlu0 %1247
        %v1250 = vmul.f32 %v1213, %v1202
        %v1251 = vmul.f32 %v1218, %v1203
        %v1252 = vmul.f32 %v1223, %v1204
        %v1253 = vmul.f32 %v1228, %v1205
        %v1254 = vmul.f32 %v1233, %v1206
        %v1255 = vmul.f32 %v1238, %v1207
        %v1256 = vmul.f32 %v1243, %v1208
        %v1257 = vmul.f32 %v1248, %v1209
        %v1258 = vadd.f32 %v1250, 0.0
        %v1259 = vadd.f32 %v1251, 0.0
        %v1260 = vadd.f32 %v1252, 0.0
        %v1261 = vadd.f32 %v1253, 0.0
        %v1262 = vadd.f32 %v1254, 0.0
        %v1263 = vadd.f32 %v1255, 0.0
        %v1264 = vadd.f32 %v1256, 0.0
        %v1265 = vadd.f32 %v1257, 0.0
        %v1266 = vsub.f32 %v739, 1.0
        %v1267 = vsub.f32 %v740, 1.0
        %v1268 = vsub.f32 %v741, 1.0
        %v1269 = vsub.f32 %v742, 1.0
        %v1270 = vsub.f32 %v743, 1.0
        %v1271 = vsub.f32 %v744, 1.0
        %v1272 = vsub.f32 %v745, 1.0
        %v1273 = vsub.f32 %v746, 1.0
        %v1274 = vand.u32 2147483647, %v1266
        %v1275 = vand.u32 2147483647, %v1267
        %v1276 = vand.u32 2147483647, %v1268
        %v1277 = vand.u32 2147483647, %v1269
        %v1278 = vand.u32 2147483647, %v1270
        %v1279 = vand.u32 2147483647, %v1271
        %v1280 = vand.u32 2147483647, %v1272
        %v1281 = vand.u32 2147483647, %v1273
        %v1282 = vsub.f32 1.0, %v1274
        %v1283 = vsub.f32 1.0, %v1275
        %v1284 = vsub.f32 1.0, %v1276
        %v1285 = vsub.f32 1.0, %v1277
        %v1286 = vsub.f32 1.0, %v1278
        %v1287 = vsub.f32 1.0, %v1279
        %v1288 = vsub.f32 1.0, %v1280
        %v1289 = vsub.f32 1.0, %v1281
        %v1290 = vmax.f32 %v1282, 0.0
        %v1291 = vmax.f32 %v1283, 0.0
        %v1292 = vmax.f32 %v1284, 0.0
        %v1293 = vmax.f32 %v1285, 0.0
        %v1294 = vmax.f32 %v1286, 0.0
        %v1295 = vmax.f32 %v1287, 0.0
        %v1296 = vmax.f32 %v1288, 0.0
        %v1297 = vmax.f32 %v1289, 0.0
        %1298 = vset.pattern.permute.xlu0 1
        %1299 = vperm.xlu0 %1298, %v1156
        %v1300 = vpop.permute.xlu0 %1299
        %1302 = vset.pattern.permute.xlu0 1
        %1303 = vperm.xlu0 %1302, %v1160
        %v1304 = vpop.permute.xlu0 %1303
        %1306 = vset.pattern.permute.xlu0 1
        %1307 = vperm.xlu0 %1306, %v1164
        %v1308 = vpop.permute.xlu0 %1307
        %1310 = vset.pattern.permute.xlu0 1
        %1311 = vperm.xlu0 %1310, %v1168
        %v1312 = vpop.permute.xlu0 %1311
        %1314 = vset.pattern.permute.xlu0 1
        %1315 = vperm.xlu0 %1314, %v1172
        %v1316 = vpop.permute.xlu0 %1315
        %1318 = vset.pattern.permute.xlu0 1
        %1319 = vperm.xlu0 %1318, %v1176
        %v1320 = vpop.permute.xlu0 %1319
        %1322 = vset.pattern.permute.xlu0 1
        %1323 = vperm.xlu0 %1322, %v1180
        %v1324 = vpop.permute.xlu0 %1323
        %1326 = vset.pattern.permute.xlu0 1
        %1327 = vperm.xlu0 %1326, %v1184
        %v1328 = vpop.permute.xlu0 %1327
        %v1330 = vmul.f32 %v1300, %v1290
        %v1331 = vmul.f32 %v1304, %v1291
        %v1332 = vmul.f32 %v1308, %v1292
        %v1333 = vmul.f32 %v1312, %v1293
        %v1334 = vmul.f32 %v1316, %v1294
        %v1335 = vmul.f32 %v1320, %v1295
        %v1336 = vmul.f32 %v1324, %v1296
        %v1337 = vmul.f32 %v1328, %v1297
        %v1338 = vadd.f32 %v1258, %v1330
        %v1339 = vadd.f32 %v1259, %v1331
        %v1340 = vadd.f32 %v1260, %v1332
        %v1341 = vadd.f32 %v1261, %v1333
        %v1342 = vadd.f32 %v1262, %v1334
        %v1343 = vadd.f32 %v1263, %v1335
        %v1344 = vadd.f32 %v1264, %v1336
        %v1345 = vadd.f32 %v1265, %v1337
        %v1346 = vsub.f32 %v739, 2.0
        %v1347 = vsub.f32 %v740, 2.0
        %v1348 = vsub.f32 %v741, 2.0
        %v1349 = vsub.f32 %v742, 2.0
        %v1350 = vsub.f32 %v743, 2.0
        %v1351 = vsub.f32 %v744, 2.0
        %v1352 = vsub.f32 %v745, 2.0
        %v1353 = vsub.f32 %v746, 2.0
        %v1354 = vand.u32 2147483647, %v1346
        %v1355 = vand.u32 2147483647, %v1347
        %v1356 = vand.u32 2147483647, %v1348
        %v1357 = vand.u32 2147483647, %v1349
        %v1358 = vand.u32 2147483647, %v1350
        %v1359 = vand.u32 2147483647, %v1351
        %v1360 = vand.u32 2147483647, %v1352
        %v1361 = vand.u32 2147483647, %v1353
        %v1362 = vsub.f32 1.0, %v1354
        %v1363 = vsub.f32 1.0, %v1355
        %v1364 = vsub.f32 1.0, %v1356
        %v1365 = vsub.f32 1.0, %v1357
        %v1366 = vsub.f32 1.0, %v1358
        %v1367 = vsub.f32 1.0, %v1359
        %v1368 = vsub.f32 1.0, %v1360
        %v1369 = vsub.f32 1.0, %v1361
        %v1370 = vmax.f32 %v1362, 0.0
        %v1371 = vmax.f32 %v1363, 0.0
        %v1372 = vmax.f32 %v1364, 0.0
        %v1373 = vmax.f32 %v1365, 0.0
        %v1374 = vmax.f32 %v1366, 0.0
        %v1375 = vmax.f32 %v1367, 0.0
        %v1376 = vmax.f32 %v1368, 0.0
        %v1377 = vmax.f32 %v1369, 0.0
        %1378 = vset.pattern.permute.xlu0 2
        %1379 = vperm.xlu0 %1378, %v1156
        %v1380 = vpop.permute.xlu0 %1379
        %1382 = vset.pattern.permute.xlu0 2
        %1383 = vperm.xlu0 %1382, %v1160
        %v1384 = vpop.permute.xlu0 %1383
        %1386 = vset.pattern.permute.xlu0 2
        %1387 = vperm.xlu0 %1386, %v1164
        %v1388 = vpop.permute.xlu0 %1387
        %1390 = vset.pattern.permute.xlu0 2
        %1391 = vperm.xlu0 %1390, %v1168
        %v1392 = vpop.permute.xlu0 %1391
        %1394 = vset.pattern.permute.xlu0 2
        %1395 = vperm.xlu0 %1394, %v1172
        %v1396 = vpop.permute.xlu0 %1395
        %1398 = vset.pattern.permute.xlu0 2
        %1399 = vperm.xlu0 %1398, %v1176
        %v1400 = vpop.permute.xlu0 %1399
        %1402 = vset.pattern.permute.xlu0 2
        %1403 = vperm.xlu0 %1402, %v1180
        %v1404 = vpop.permute.xlu0 %1403
        %1406 = vset.pattern.permute.xlu0 2
        %1407 = vperm.xlu0 %1406, %v1184
        %v1408 = vpop.permute.xlu0 %1407
        %v1410 = vmul.f32 %v1380, %v1370
        %v1411 = vmul.f32 %v1384, %v1371
        %v1412 = vmul.f32 %v1388, %v1372
        %v1413 = vmul.f32 %v1392, %v1373
        %v1414 = vmul.f32 %v1396, %v1374
        %v1415 = vmul.f32 %v1400, %v1375
        %v1416 = vmul.f32 %v1404, %v1376
        %v1417 = vmul.f32 %v1408, %v1377
        %v1418 = vadd.f32 %v1338, %v1410
        %v1419 = vadd.f32 %v1339, %v1411
        %v1420 = vadd.f32 %v1340, %v1412
        %v1421 = vadd.f32 %v1341, %v1413
        %v1422 = vadd.f32 %v1342, %v1414
        %v1423 = vadd.f32 %v1343, %v1415
        %v1424 = vadd.f32 %v1344, %v1416
        %v1425 = vadd.f32 %v1345, %v1417
        %v1426 = vsub.f32 %v739, 3.0
        %v1427 = vsub.f32 %v740, 3.0
        %v1428 = vsub.f32 %v741, 3.0
        %v1429 = vsub.f32 %v742, 3.0
        %v1430 = vsub.f32 %v743, 3.0
        %v1431 = vsub.f32 %v744, 3.0
        %v1432 = vsub.f32 %v745, 3.0
        %v1433 = vsub.f32 %v746, 3.0
        %v1434 = vand.u32 2147483647, %v1426
        %v1435 = vand.u32 2147483647, %v1427
        %v1436 = vand.u32 2147483647, %v1428
        %v1437 = vand.u32 2147483647, %v1429
        %v1438 = vand.u32 2147483647, %v1430
        %v1439 = vand.u32 2147483647, %v1431
        %v1440 = vand.u32 2147483647, %v1432
        %v1441 = vand.u32 2147483647, %v1433
        %v1442 = vsub.f32 1.0, %v1434
        %v1443 = vsub.f32 1.0, %v1435
        %v1444 = vsub.f32 1.0, %v1436
        %v1445 = vsub.f32 1.0, %v1437
        %v1446 = vsub.f32 1.0, %v1438
        %v1447 = vsub.f32 1.0, %v1439
        %v1448 = vsub.f32 1.0, %v1440
        %v1449 = vsub.f32 1.0, %v1441
        %v1450 = vmax.f32 %v1442, 0.0
        %v1451 = vmax.f32 %v1443, 0.0
        %v1452 = vmax.f32 %v1444, 0.0
        %v1453 = vmax.f32 %v1445, 0.0
        %v1454 = vmax.f32 %v1446, 0.0
        %v1455 = vmax.f32 %v1447, 0.0
        %v1456 = vmax.f32 %v1448, 0.0
        %v1457 = vmax.f32 %v1449, 0.0
        %1458 = vset.pattern.permute.xlu0 3
        %1459 = vperm.xlu0 %1458, %v1156
        %v1460 = vpop.permute.xlu0 %1459
        %1462 = vset.pattern.permute.xlu0 3
        %1463 = vperm.xlu0 %1462, %v1160
        %v1464 = vpop.permute.xlu0 %1463
        %1466 = vset.pattern.permute.xlu0 3
        %1467 = vperm.xlu0 %1466, %v1164
        %v1468 = vpop.permute.xlu0 %1467
        %1470 = vset.pattern.permute.xlu0 3
        %1471 = vperm.xlu0 %1470, %v1168
        %v1472 = vpop.permute.xlu0 %1471
        %1474 = vset.pattern.permute.xlu0 3
        %1475 = vperm.xlu0 %1474, %v1172
        %v1476 = vpop.permute.xlu0 %1475
        %1478 = vset.pattern.permute.xlu0 3
        %1479 = vperm.xlu0 %1478, %v1176
        %v1480 = vpop.permute.xlu0 %1479
        %1482 = vset.pattern.permute.xlu0 3
        %1483 = vperm.xlu0 %1482, %v1180
        %v1484 = vpop.permute.xlu0 %1483
        %1486 = vset.pattern.permute.xlu0 3
        %1487 = vperm.xlu0 %1486, %v1184
        %v1488 = vpop.permute.xlu0 %1487
        %v1490 = vmul.f32 %v1460, %v1450
        %v1491 = vmul.f32 %v1464, %v1451
        %v1492 = vmul.f32 %v1468, %v1452
        %v1493 = vmul.f32 %v1472, %v1453
        %v1494 = vmul.f32 %v1476, %v1454
        %v1495 = vmul.f32 %v1480, %v1455
        %v1496 = vmul.f32 %v1484, %v1456
        %v1497 = vmul.f32 %v1488, %v1457
        %v1498 = vadd.f32 %v1418, %v1490
        %v1499 = vadd.f32 %v1419, %v1491
        %v1500 = vadd.f32 %v1420, %v1492
        %v1501 = vadd.f32 %v1421, %v1493
        %v1502 = vadd.f32 %v1422, %v1494
        %v1503 = vadd.f32 %v1423, %v1495
        %v1504 = vadd.f32 %v1424, %v1496
        %v1505 = vadd.f32 %v1425, %v1497
        %v1506 = vsub.f32 %v739, 4.0
        %v1507 = vsub.f32 %v740, 4.0
        %v1508 = vsub.f32 %v741, 4.0
        %v1509 = vsub.f32 %v742, 4.0
        %v1510 = vsub.f32 %v743, 4.0
        %v1511 = vsub.f32 %v744, 4.0
        %v1512 = vsub.f32 %v745, 4.0
        %v1513 = vsub.f32 %v746, 4.0
        %v1514 = vand.u32 2147483647, %v1506
        %v1515 = vand.u32 2147483647, %v1507
        %v1516 = vand.u32 2147483647, %v1508
        %v1517 = vand.u32 2147483647, %v1509
        %v1518 = vand.u32 2147483647, %v1510
        %v1519 = vand.u32 2147483647, %v1511
        %v1520 = vand.u32 2147483647, %v1512
        %v1521 = vand.u32 2147483647, %v1513
        %v1522 = vsub.f32 1.0, %v1514
        %v1523 = vsub.f32 1.0, %v1515
        %v1524 = vsub.f32 1.0, %v1516
        %v1525 = vsub.f32 1.0, %v1517
        %v1526 = vsub.f32 1.0, %v1518
        %v1527 = vsub.f32 1.0, %v1519
        %v1528 = vsub.f32 1.0, %v1520
        %v1529 = vsub.f32 1.0, %v1521
        %v1530 = vmax.f32 %v1522, 0.0
        %v1531 = vmax.f32 %v1523, 0.0
        %v1532 = vmax.f32 %v1524, 0.0
        %v1533 = vmax.f32 %v1525, 0.0
        %v1534 = vmax.f32 %v1526, 0.0
        %v1535 = vmax.f32 %v1527, 0.0
        %v1536 = vmax.f32 %v1528, 0.0
        %v1537 = vmax.f32 %v1529, 0.0
        %1538 = vset.pattern.permute.xlu0 4
        %1539 = vperm.xlu0 %1538, %v1156
        %v1540 = vpop.permute.xlu0 %1539
        %1542 = vset.pattern.permute.xlu0 4
        %1543 = vperm.xlu0 %1542, %v1160
        %v1544 = vpop.permute.xlu0 %1543
        %1546 = vset.pattern.permute.xlu0 4
        %1547 = vperm.xlu0 %1546, %v1164
        %v1548 = vpop.permute.xlu0 %1547
        %1550 = vset.pattern.permute.xlu0 4
        %1551 = vperm.xlu0 %1550, %v1168
        %v1552 = vpop.permute.xlu0 %1551
        %1554 = vset.pattern.permute.xlu0 4
        %1555 = vperm.xlu0 %1554, %v1172
        %v1556 = vpop.permute.xlu0 %1555
        %1558 = vset.pattern.permute.xlu0 4
        %1559 = vperm.xlu0 %1558, %v1176
        %v1560 = vpop.permute.xlu0 %1559
        %1562 = vset.pattern.permute.xlu0 4
        %1563 = vperm.xlu0 %1562, %v1180
        %v1564 = vpop.permute.xlu0 %1563
        %1566 = vset.pattern.permute.xlu0 4
        %1567 = vperm.xlu0 %1566, %v1184
        %v1568 = vpop.permute.xlu0 %1567
        %v1570 = vmul.f32 %v1540, %v1530
        %v1571 = vmul.f32 %v1544, %v1531
        %v1572 = vmul.f32 %v1548, %v1532
        %v1573 = vmul.f32 %v1552, %v1533
        %v1574 = vmul.f32 %v1556, %v1534
        %v1575 = vmul.f32 %v1560, %v1535
        %v1576 = vmul.f32 %v1564, %v1536
        %v1577 = vmul.f32 %v1568, %v1537
        %v1578 = vadd.f32 %v1498, %v1570
        %v1579 = vadd.f32 %v1499, %v1571
        %v1580 = vadd.f32 %v1500, %v1572
        %v1581 = vadd.f32 %v1501, %v1573
        %v1582 = vadd.f32 %v1502, %v1574
        %v1583 = vadd.f32 %v1503, %v1575
        %v1584 = vadd.f32 %v1504, %v1576
        %v1585 = vadd.f32 %v1505, %v1577
        %v1586 = vsub.f32 %v739, 5.0
        %v1587 = vsub.f32 %v740, 5.0
        %v1588 = vsub.f32 %v741, 5.0
        %v1589 = vsub.f32 %v742, 5.0
        %v1590 = vsub.f32 %v743, 5.0
        %v1591 = vsub.f32 %v744, 5.0
        %v1592 = vsub.f32 %v745, 5.0
        %v1593 = vsub.f32 %v746, 5.0
        %v1594 = vand.u32 2147483647, %v1586
        %v1595 = vand.u32 2147483647, %v1587
        %v1596 = vand.u32 2147483647, %v1588
        %v1597 = vand.u32 2147483647, %v1589
        %v1598 = vand.u32 2147483647, %v1590
        %v1599 = vand.u32 2147483647, %v1591
        %v1600 = vand.u32 2147483647, %v1592
        %v1601 = vand.u32 2147483647, %v1593
        %v1602 = vsub.f32 1.0, %v1594
        %v1603 = vsub.f32 1.0, %v1595
        %v1604 = vsub.f32 1.0, %v1596
        %v1605 = vsub.f32 1.0, %v1597
        %v1606 = vsub.f32 1.0, %v1598
        %v1607 = vsub.f32 1.0, %v1599
        %v1608 = vsub.f32 1.0, %v1600
        %v1609 = vsub.f32 1.0, %v1601
        %v1610 = vmax.f32 %v1602, 0.0
        %v1611 = vmax.f32 %v1603, 0.0
        %v1612 = vmax.f32 %v1604, 0.0
        %v1613 = vmax.f32 %v1605, 0.0
        %v1614 = vmax.f32 %v1606, 0.0
        %v1615 = vmax.f32 %v1607, 0.0
        %v1616 = vmax.f32 %v1608, 0.0
        %v1617 = vmax.f32 %v1609, 0.0
        %1618 = vset.pattern.permute.xlu0 5
        %1619 = vperm.xlu0 %1618, %v1156
        %v1620 = vpop.permute.xlu0 %1619
        %1622 = vset.pattern.permute.xlu0 5
        %1623 = vperm.xlu0 %1622, %v1160
        %v1624 = vpop.permute.xlu0 %1623
        %1626 = vset.pattern.permute.xlu0 5
        %1627 = vperm.xlu0 %1626, %v1164
        %v1628 = vpop.permute.xlu0 %1627
        %1630 = vset.pattern.permute.xlu0 5
        %1631 = vperm.xlu0 %1630, %v1168
        %v1632 = vpop.permute.xlu0 %1631
        %1634 = vset.pattern.permute.xlu0 5
        %1635 = vperm.xlu0 %1634, %v1172
        %v1636 = vpop.permute.xlu0 %1635
        %1638 = vset.pattern.permute.xlu0 5
        %1639 = vperm.xlu0 %1638, %v1176
        %v1640 = vpop.permute.xlu0 %1639
        %1642 = vset.pattern.permute.xlu0 5
        %1643 = vperm.xlu0 %1642, %v1180
        %v1644 = vpop.permute.xlu0 %1643
        %1646 = vset.pattern.permute.xlu0 5
        %1647 = vperm.xlu0 %1646, %v1184
        %v1648 = vpop.permute.xlu0 %1647
        %v1650 = vmul.f32 %v1620, %v1610
        %v1651 = vmul.f32 %v1624, %v1611
        %v1652 = vmul.f32 %v1628, %v1612
        %v1653 = vmul.f32 %v1632, %v1613
        %v1654 = vmul.f32 %v1636, %v1614
        %v1655 = vmul.f32 %v1640, %v1615
        %v1656 = vmul.f32 %v1644, %v1616
        %v1657 = vmul.f32 %v1648, %v1617
        %v1658 = vadd.f32 %v1578, %v1650
        %v1659 = vadd.f32 %v1579, %v1651
        %v1660 = vadd.f32 %v1580, %v1652
        %v1661 = vadd.f32 %v1581, %v1653
        %v1662 = vadd.f32 %v1582, %v1654
        %v1663 = vadd.f32 %v1583, %v1655
        %v1664 = vadd.f32 %v1584, %v1656
        %v1665 = vadd.f32 %v1585, %v1657
        %v1666 = vsub.f32 %v739, 6.0
        %v1667 = vsub.f32 %v740, 6.0
        %v1668 = vsub.f32 %v741, 6.0
        %v1669 = vsub.f32 %v742, 6.0
        %v1670 = vsub.f32 %v743, 6.0
        %v1671 = vsub.f32 %v744, 6.0
        %v1672 = vsub.f32 %v745, 6.0
        %v1673 = vsub.f32 %v746, 6.0
        %v1674 = vand.u32 2147483647, %v1666
        %v1675 = vand.u32 2147483647, %v1667
        %v1676 = vand.u32 2147483647, %v1668
        %v1677 = vand.u32 2147483647, %v1669
        %v1678 = vand.u32 2147483647, %v1670
        %v1679 = vand.u32 2147483647, %v1671
        %v1680 = vand.u32 2147483647, %v1672
        %v1681 = vand.u32 2147483647, %v1673
        %v1682 = vsub.f32 1.0, %v1674
        %v1683 = vsub.f32 1.0, %v1675
        %v1684 = vsub.f32 1.0, %v1676
        %v1685 = vsub.f32 1.0, %v1677
        %v1686 = vsub.f32 1.0, %v1678
        %v1687 = vsub.f32 1.0, %v1679
        %v1688 = vsub.f32 1.0, %v1680
        %v1689 = vsub.f32 1.0, %v1681
        %v1690 = vmax.f32 %v1682, 0.0
        %v1691 = vmax.f32 %v1683, 0.0
        %v1692 = vmax.f32 %v1684, 0.0
        %v1693 = vmax.f32 %v1685, 0.0
        %v1694 = vmax.f32 %v1686, 0.0
        %v1695 = vmax.f32 %v1687, 0.0
        %v1696 = vmax.f32 %v1688, 0.0
        %v1697 = vmax.f32 %v1689, 0.0
        %1698 = vset.pattern.permute.xlu0 6
        %1699 = vperm.xlu0 %1698, %v1156
        %v1700 = vpop.permute.xlu0 %1699
        %1702 = vset.pattern.permute.xlu0 6
        %1703 = vperm.xlu0 %1702, %v1160
        %v1704 = vpop.permute.xlu0 %1703
        %1706 = vset.pattern.permute.xlu0 6
        %1707 = vperm.xlu0 %1706, %v1164
        %v1708 = vpop.permute.xlu0 %1707
        %1710 = vset.pattern.permute.xlu0 6
        %1711 = vperm.xlu0 %1710, %v1168
        %v1712 = vpop.permute.xlu0 %1711
        %1714 = vset.pattern.permute.xlu0 6
        %1715 = vperm.xlu0 %1714, %v1172
        %v1716 = vpop.permute.xlu0 %1715
        %1718 = vset.pattern.permute.xlu0 6
        %1719 = vperm.xlu0 %1718, %v1176
        %v1720 = vpop.permute.xlu0 %1719
        %1722 = vset.pattern.permute.xlu0 6
        %1723 = vperm.xlu0 %1722, %v1180
        %v1724 = vpop.permute.xlu0 %1723
        %1726 = vset.pattern.permute.xlu0 6
        %1727 = vperm.xlu0 %1726, %v1184
        %v1728 = vpop.permute.xlu0 %1727
        %v1730 = vmul.f32 %v1700, %v1690
        %v1731 = vmul.f32 %v1704, %v1691
        %v1732 = vmul.f32 %v1708, %v1692
        %v1733 = vmul.f32 %v1712, %v1693
        %v1734 = vmul.f32 %v1716, %v1694
        %v1735 = vmul.f32 %v1720, %v1695
        %v1736 = vmul.f32 %v1724, %v1696
        %v1737 = vmul.f32 %v1728, %v1697
        %v1738 = vadd.f32 %v1658, %v1730
        %v1739 = vadd.f32 %v1659, %v1731
        %v1740 = vadd.f32 %v1660, %v1732
        %v1741 = vadd.f32 %v1661, %v1733
        %v1742 = vadd.f32 %v1662, %v1734
        %v1743 = vadd.f32 %v1663, %v1735
        %v1744 = vadd.f32 %v1664, %v1736
        %v1745 = vadd.f32 %v1665, %v1737
        %v1746 = vsub.f32 %v739, 7.0
        %v1747 = vsub.f32 %v740, 7.0
        %v1748 = vsub.f32 %v741, 7.0
        %v1749 = vsub.f32 %v742, 7.0
        %v1750 = vsub.f32 %v743, 7.0
        %v1751 = vsub.f32 %v744, 7.0
        %v1752 = vsub.f32 %v745, 7.0
        %v1753 = vsub.f32 %v746, 7.0
        %v1754 = vand.u32 2147483647, %v1746
        %v1755 = vand.u32 2147483647, %v1747
        %v1756 = vand.u32 2147483647, %v1748
        %v1757 = vand.u32 2147483647, %v1749
        %v1758 = vand.u32 2147483647, %v1750
        %v1759 = vand.u32 2147483647, %v1751
        %v1760 = vand.u32 2147483647, %v1752
        %v1761 = vand.u32 2147483647, %v1753
        %v1762 = vsub.f32 1.0, %v1754
        %v1763 = vsub.f32 1.0, %v1755
        %v1764 = vsub.f32 1.0, %v1756
        %v1765 = vsub.f32 1.0, %v1757
        %v1766 = vsub.f32 1.0, %v1758
        %v1767 = vsub.f32 1.0, %v1759
        %v1768 = vsub.f32 1.0, %v1760
        %v1769 = vsub.f32 1.0, %v1761
        %v1770 = vmax.f32 %v1762, 0.0
        %v1771 = vmax.f32 %v1763, 0.0
        %v1772 = vmax.f32 %v1764, 0.0
        %v1773 = vmax.f32 %v1765, 0.0
        %v1774 = vmax.f32 %v1766, 0.0
        %v1775 = vmax.f32 %v1767, 0.0
        %v1776 = vmax.f32 %v1768, 0.0
        %v1777 = vmax.f32 %v1769, 0.0
        %1778 = vset.pattern.permute.xlu0 7
        %1779 = vperm.xlu0 %1778, %v1156
        %v1780 = vpop.permute.xlu0 %1779
        %1782 = vset.pattern.permute.xlu0 7
        %1783 = vperm.xlu0 %1782, %v1160
        %v1784 = vpop.permute.xlu0 %1783
        %1786 = vset.pattern.permute.xlu0 7
        %1787 = vperm.xlu0 %1786, %v1164
        %v1788 = vpop.permute.xlu0 %1787
        %1790 = vset.pattern.permute.xlu0 7
        %1791 = vperm.xlu0 %1790, %v1168
        %v1792 = vpop.permute.xlu0 %1791
        %1794 = vset.pattern.permute.xlu0 7
        %1795 = vperm.xlu0 %1794, %v1172
        %v1796 = vpop.permute.xlu0 %1795
        %1798 = vset.pattern.permute.xlu0 7
        %1799 = vperm.xlu0 %1798, %v1176
        %v1800 = vpop.permute.xlu0 %1799
        %1802 = vset.pattern.permute.xlu0 7
        %1803 = vperm.xlu0 %1802, %v1180
        %v1804 = vpop.permute.xlu0 %1803
        %1806 = vset.pattern.permute.xlu0 7
        %1807 = vperm.xlu0 %1806, %v1184
        %v1808 = vpop.permute.xlu0 %1807
        %v1810 = vmul.f32 %v1780, %v1770
        %v1811 = vmul.f32 %v1784, %v1771
        %v1812 = vmul.f32 %v1788, %v1772
        %v1813 = vmul.f32 %v1792, %v1773
        %v1814 = vmul.f32 %v1796, %v1774
        %v1815 = vmul.f32 %v1800, %v1775
        %v1816 = vmul.f32 %v1804, %v1776
        %v1817 = vmul.f32 %v1808, %v1777
        %v1818 = vadd.f32 %v1738, %v1810
        %v1819 = vadd.f32 %v1739, %v1811
        %v1820 = vadd.f32 %v1740, %v1812
        %v1821 = vadd.f32 %v1741, %v1813
        %v1822 = vadd.f32 %v1742, %v1814
        %v1823 = vadd.f32 %v1743, %v1815
        %v1824 = vadd.f32 %v1744, %v1816
        %v1825 = vadd.f32 %v1745, %v1817
        %1826 = vst [vmem:[%s214] sm:$0xff] %v1818
        %1827 = vst [vmem:[%s214 + $0x8] sm:$0xff] %v1819
        %1828 = vst [vmem:[%s214 + $0x10] sm:$0xff] %v1820
        %1829 = vst [vmem:[%s214 + $0x18] sm:$0xff] %v1821
        %1830 = vst [vmem:[%s214 + $0x20] sm:$0xff] %v1822
        %1831 = vst [vmem:[%s214 + $0x28] sm:$0xff] %v1823
        %1832 = vst [vmem:[%s214 + $0x30] sm:$0xff] %v1824
        %1833 = vst [vmem:[%s214 + $0x38] sm:$0xff] %v1825
        %s1834 = sand.u32 %s116, 1
        %s1835 = scalar_lea.sflag [#allocation3], %s1834
        %s1836 = sand.u32 %s116, 1
        %s1837 = smul.addr %s1836, 64
        %s1838 = scalar_lea.vmem [#allocation2], %s1837
        // Predicated region
        $region33: #{tpu_custom_call.1} parent=31 // pred_check
          %p1839 = pneg %p126
        $region34: #{tpu_custom_call.1} parent=31 // pred_check_branch
          %1841 = sbr.rel (%p1839) target = $region36
        $region35: #{tpu_custom_call.1} parent=31 // pred_region
          %s1842 = smul.u32 8, %s22
          %1844 = vsyncadd %s1835, 0
          %s1845 = smul.addr %s21, 16
          %s1846 = sadd.s32 %s1842, %s1845
          %s1847 = smul.addr %s1846, 8
          %s1848 = scalar_lea.hbm %s3, %s1847
          %s1849 = sshll.u32 %s1838, 4
          %s1850 = int_to_ptr.vmem [resolvable:$true] %s1849
          %s1851 = sshll.u32 %s1848, 4
          %s1852 = int_to_ptr.hbm [resolvable:$true] %s1851
          %1857 = dma.vmem_to_hbm [thread:$0]  %s1850, 1024, %s1852, %s1835, 128, 128, 8
        $region36: #{tpu_custom_call.1} parent=31 // pred_fallthru
          _
      $region32: #{tpu_custom_call.1} parent=5 // pred_fallthru
        _
      %p1858 = scmp.le.s32.totalorder 2, %s12
      // Predicated region
      $region37: #{tpu_custom_call.1} parent=5 // pred_check
        %p1859 = pneg %p1858
      $region38: #{tpu_custom_call.1} parent=5 // pred_check_branch
        %1861 = sbr.rel (%p1859) target = $region40
      $region39: #{tpu_custom_call.1} parent=5 // pred_region
        %s1862 = ssub.s32 %s12, 2
        // Predicated region
        $region41: #{tpu_custom_call.1} parent=39 // pred_check
          %p1863 = pneg %p132
        $region42: #{tpu_custom_call.1} parent=39 // pred_check_branch
          %1865 = sbr.rel (%p1863) target = $region44
        $region43: #{tpu_custom_call.1} parent=39 // pred_region
          %s1866 = sand.u32 %s117, 1
          %s1867 = scalar_lea.sflag [#allocation3], %s1866
          %s1868 = sand.u32 %s117, 1
          %s1869 = smul.addr %s1868, 64
          %s1870 = scalar_lea.vmem [#allocation2], %s1869
          %1872 = dma.done %s1867, 1024
        $region44: #{tpu_custom_call.1} parent=39 // pred_fallthru
          _
      $region40: #{tpu_custom_call.1} parent=5 // pred_fallthru
        _
    $region6: #{tpu_custom_call.1} parent=1 // loop_footer
      %s16 = sadd.s32 1, %s12
    $region7: #{tpu_custom_call.1} parent=1 // loop_footer_branch
      %11 = sbr.rel target = $region3
    $region8: #{tpu_custom_call.1} parent=1 // loop_exit
      _
    %1873 = vsyncpa [#allocation3], 1
    %s1874 = scalar_lea.sflag [#allocation3], 1
    %1875 = vsyncpa %s1874, 1

</llo_original>
